<compile_context>
chip_gen: v7x
topology: tpu7x:2x2x1
jax: 0.10.0
libtpu: 0.0.40
codegen_flags: <defaults>
</compile_context>

<pallas_src>
import functools

import jax
import jax.numpy as jnp
from jax.experimental import pallas as pl
from jax.experimental.pallas import tpu as pltpu

GAMMA = 10 ^ 3          # NOTE: Python XOR, evaluates to 9 — faithful to the original source.
NUM_CLASSES = 3
FEAT_DIM = 64
WIDTH = 32
D_IN = 16
SIM_THRESHOLD = 0.9
CMMD_SIGMA = 1.0        # TODO(synk): exact `cmmd.cmmd` implementation not provided; class-conditional RBF MMD used.

# lane-dense padded sizes (everything padded to a full 128-lane tile)
LANE = 128
D_PAD = LANE            # input feature dim
F_PAD = LANE            # backbone feature dim
W_PAD = LANE            # classifier hidden width
C_PAD = LANE            # class dim
NEG_INF = -1.0e30       # padded-class logit bias -> softmax prob exactly 0


# ---------------------------------------------------------------------------
# Fused Pallas kernel
# ---------------------------------------------------------------------------
def _make_fused_kernel(n_src, n_tgt, conf_thr):
    total = n_src + n_tgt
    gamma_mmd = 1.0 / (2.0 * float(GAMMA) ** 2)      # mix_rbf_mmd2 with sigma = GAMMA
    gamma_cmmd = 1.0 / (2.0 * float(CMMD_SIGMA) ** 2)
    dot_t = (((1,), (1,)), ((), ()))                 # A @ B^T contraction

    def kernel(x_ref, sl_ref, w0_ref, b0_ref, w1_ref, b1_ref, w2_ref, b2_ref,
               clf_ref, sims_ref, loss_ref):
        x = x_ref[...]                               # (T, D_PAD) source;target
        sl = sl_ref[...]                             # (n_src, C_PAD) one-hot (padded)

        # ---- backbone (dense stand-in) + classifier, source & target fused ----
        # TODO(synk): real `backbone.network_dict['CFE']()` unavailable; dense projection used.
        feat = jnp.maximum(
            jnp.dot(x, w0_ref[...], preferred_element_type=jnp.float32) + b0_ref[...], 0.0)
        h = jnp.maximum(
            jnp.dot(feat, w1_ref[...], preferred_element_type=jnp.float32) + b1_ref[...], 0.0)
        # TODO(synk): nn.Dropout(0.5) is identity here (inference-mode forward semantics).
        clf = jnp.dot(h, w2_ref[...], preferred_element_type=jnp.float32) + b2_ref[...]
        clf_ref[...] = clf[:n_src, :]                # raw source logits, lane-dense

        # ---- softmax over the class axis (padded lanes carry -1e30 bias) ------
        z = clf - jnp.max(clf, axis=1, keepdims=True)
        ez = jnp.exp(z)
        probs = ez * pl.reciprocal(jnp.sum(ez, axis=1, keepdims=True), approx=True)

        # ---- cosine-similarity matrices (rsqrt on EUP, no divides) ------------
        pn = probs * jax.lax.rsqrt(jnp.sum(probs * probs, axis=1, keepdims=True))
        pn_s = pn[:n_src, :]
        pn_t = pn[n_src:, :]
        sim_s = jax.lax.dot_general(pn_s, pn_s, dot_t, preferred_element_type=jnp.float32)
        sim_t = jax.lax.dot_general(pn_t, pn_t, dot_t, preferred_element_type=jnp.float32)
        sl_n = sl * jax.lax.rsqrt(jnp.sum(sl * sl, axis=1, keepdims=True))
        est_truth = jax.lax.dot_general(sl_n, sl_n, dot_t, preferred_element_type=jnp.float32)
        est_truth_t = (sim_t > SIM_THRESHOLD).astype(jnp.float32)
        # one lane-packed slab: [sim_s | sim_t | est_truth | est_truth_t]
        sims_ref[...] = jnp.concatenate([sim_s, sim_t, est_truth, est_truth_t], axis=1)

        # ---- confident-target pseudo labels (in-kernel, no host round trip) ----
        probs_t = probs[n_src:, :]
        maxp_t = jnp.max(probs_t, axis=1, keepdims=True)
        conf = (maxp_t > conf_thr).astype(jnp.float32)            # (n_tgt, 1)
        # one-hot of argmax via equality with the row max (float ties are measure-zero)
        wt = (probs_t >= maxp_t).astype(jnp.float32) * conf       # (n_tgt, C_PAD)

        # ---- ONE shared pairwise squared-distance matrix for both MMD losses --
        g = jax.lax.dot_general(feat, feat, dot_t, preferred_element_type=jnp.float32)
        rows = jax.lax.broadcasted_iota(jnp.int32, (total, total), 0)
        cols = jax.lax.broadcasted_iota(jnp.int32, (total, total), 1)
        eye = (rows == cols).astype(jnp.float32)
        sq_row = jnp.sum(eye * g, axis=0, keepdims=True)          # (1, T) diag (no transpose)
        sq_col = jnp.sum(eye * g, axis=1, keepdims=True)          # (T, 1) diag
        d2 = jnp.maximum(sq_col + sq_row - 2.0 * g, 0.0)          # clamp fp cancellation

        k_mmd = jnp.exp(-gamma_mmd * d2)
        k_cmmd = jnp.exp(-gamma_cmmd * d2)

        # ---- biased mix_rbf_mmd2(source, target, [GAMMA]) ----------------------
        is_src_r = rows < n_src
        is_src_c = cols < n_src
        m_ss = jnp.logical_and(is_src_r, is_src_c).astype(jnp.float32)
        m_tt = jnp.logical_and(jnp.logical_not(is_src_r),
                               jnp.logical_not(is_src_c)).astype(jnp.float32)
        m_st = jnp.logical_and(is_src_r, jnp.logical_not(is_src_c)).astype(jnp.float32)
        mmd2 = (jnp.sum(k_mmd * m_ss) * (1.0 / (n_src * n_src))
                + jnp.sum(k_mmd * m_tt) * (1.0 / (n_tgt * n_tgt))
                - 2.0 * jnp.sum(k_mmd * m_st) * (1.0 / (n_src * n_tgt)))

        # ---- class-conditional MMD (cmmd approximation) ------------------------
        w_s = jnp.concatenate([sl, jnp.zeros((n_tgt, C_PAD), jnp.float32)], axis=0)
        w_t = jnp.concatenate([jnp.zeros((n_src, C_PAD), jnp.float32), wt], axis=0)
        ka = jnp.dot(k_cmmd, w_s, preferred_element_type=jnp.float32)   # (T, C_PAD)
        kb = jnp.dot(k_cmmd, w_t, preferred_element_type=jnp.float32)   # (T, C_PAD)
        ss = jnp.sum(w_s * ka, axis=0, keepdims=True)                   # (1, C_PAD)
        st = jnp.sum(w_s * kb, axis=0, keepdims=True)
        tt = jnp.sum(w_t * kb, axis=0, keepdims=True)
        ns = jnp.sum(w_s, axis=0, keepdims=True)
        nt = jnp.sum(w_t, axis=0, keepdims=True)
        valid = jnp.logical_and(ns > 0.0, nt > 0.0)
        sns = jnp.maximum(ns, 1.0)
        snt = jnp.maximum(nt, 1.0)
        mmd_c = ss / (sns * sns) + tt / (snt * snt) - 2.0 * st / (sns * snt)
        mmd_c = jnp.where(valid, mmd_c, 0.0)
        n_valid = jnp.sum(valid.astype(jnp.float32))
        cmmd = jnp.sum(mmd_c) / jnp.maximum(n_valid, 1.0)

        # both loss scalars in one (1, 2) row
        lane_idx = jax.lax.broadcasted_iota(jnp.int32, (1, 2), 1)
        loss_ref[...] = jnp.where(lane_idx == 0, mmd2, cmmd)

    return kernel


def _fused_forward(conf_thr, xp, slp, params):
    n_src = slp.shape[0]
    n_tgt = xp.shape[0] - n_src
    kernel = _make_fused_kernel(n_src, n_tgt, conf_thr)
    vmem = pl.BlockSpec(memory_space=pltpu.MemorySpace.VMEM)
    out_shape = (jax.ShapeDtypeStruct((n_src, C_PAD), jnp.float32),      # source clf (padded)
                 jax.ShapeDtypeStruct((n_src, 4 * n_src), jnp.float32),  # packed sim matrices
                 jax.ShapeDtypeStruct((1, 2), jnp.float32))              # [mmd2, cmmd]
    return pl.pallas_call(
        kernel,
        in_specs=[vmem] * (2 + len(params)),
        out_specs=(vmem, vmem, vmem),
        out_shape=out_shape,
    )(xp, slp, *params)


# ---------------------------------------------------------------------------
# Parameters (padded to lane-dense shapes at init time; padding is zeros, so
# the math is identical to the un-padded module)
# ---------------------------------------------------------------------------
def init_params(key, d_in=D_IN):
    k0, k1, k2 = jax.random.split(key, 3)
    w0 = jnp.zeros((D_PAD, F_PAD), jnp.float32).at[:d_in, :FEAT_DIM].set(
        0.1 * jax.random.normal(k0, (d_in, FEAT_DIM), jnp.float32))
    b0 = jnp.zeros((1, F_PAD), jnp.float32)
    w1 = jnp.zeros((F_PAD, W_PAD), jnp.float32).at[:FEAT_DIM, :WIDTH].set(
        0.1 * jax.random.normal(k1, (FEAT_DIM, WIDTH), jnp.float32))
    b1 = jnp.zeros((1, W_PAD), jnp.float32)
    w2 = jnp.zeros((W_PAD, C_PAD), jnp.float32).at[:WIDTH, :NUM_CLASSES].set(
        0.1 * jax.random.normal(k2, (WIDTH, NUM_CLASSES), jnp.float32))
    # padded classes get a huge negative bias so the 128-lane softmax equals the
    # 3-class softmax exactly (their probability underflows to 0).
    b2 = jnp.full((1, C_PAD), NEG_INF, jnp.float32).at[0, :NUM_CLASSES].set(0.0)
    return (w0, b0, w1, b1, w2, b2)


# ---------------------------------------------------------------------------
# Transfer_Net forward
# ---------------------------------------------------------------------------
@functools.partial(jax.jit, static_argnums=(0,))
def transfer_net_forward(e, source, target, s_label, params):
    n_src, d_in = source.shape
    n_tgt = target.shape[0]
    assert n_src == n_tgt, "paired source/target batches expected"

    # epoch-dependent confidence threshold (epoch `e` is static Python, as in the reference)
    if 0 <= e < 10:
        conf_thr = 0.0
    elif 10 <= e < 40:
        conf_thr = 0.5
    elif 40 <= e <= 85:
        conf_thr = 0.75
    else:
        conf_thr = 1.0

    # one combined (2B, 128) lane-dense batch -> a single kernel launch total
    x = jnp.concatenate([source, target], axis=0)
    xp = jnp.pad(x, ((0, 0), (0, D_PAD - d_in)))
    slp = jnp.pad(s_label, ((0, 0), (0, C_PAD - s_label.shape[1])))

    clf_pad, sims, losses = _fused_forward(conf_thr, xp, slp, params)

    b = n_src
    source_clf = clf_pad[:, :NUM_CLASSES]
    sim_matrix = sims[:, 0 * b:1 * b]
    sim_matrix_target = sims[:, 1 * b:2 * b]
    estimated_sim_truth = sims[:, 2 * b:3 * b]
    estimated_sim_truth_target = sims[:, 3 * b:4 * b]
    transfer_loss = losses[0, 0]
    cmmd_loss = losses[0, 1]
    return (source_clf, transfer_loss, cmmd_loss, sim_matrix, sim_matrix_target,
            estimated_sim_truth, estimated_sim_truth_target)


if __name__ == "__main__":
    key = jax.random.PRNGKey(0)
    k_src, k_tgt, k_lbl, k_par = jax.random.split(key, 4)
    B = 8
    source = jax.random.normal(k_src, (B, D_IN), jnp.float32)
    target = jax.random.normal(k_tgt, (B, D_IN), jnp.float32)
    lbl_idx = jax.random.randint(k_lbl, (B,), 0, NUM_CLASSES)
    s_label = jax.nn.one_hot(lbl_idx, NUM_CLASSES, dtype=jnp.float32)
    params = init_params(k_par, D_IN)

    outs = transfer_net_forward(42, source, target, s_label, params)
    jax.block_until_ready(outs)
    print("KERNEL_OK")
</pallas_src>

<mosaic_0001>
module attributes {stable_mosaic.version = 11 : i64} {
  func.func @kernel(%arg0: memref<16x128xf32, #tpu.memory_space<vmem>>, %arg1: memref<8x128xf32, #tpu.memory_space<vmem>>, %arg2: memref<128x128xf32, #tpu.memory_space<vmem>>, %arg3: memref<1x128xf32, #tpu.memory_space<vmem>>, %arg4: memref<128x128xf32, #tpu.memory_space<vmem>>, %arg5: memref<1x128xf32, #tpu.memory_space<vmem>>, %arg6: memref<128x128xf32, #tpu.memory_space<vmem>>, %arg7: memref<1x128xf32, #tpu.memory_space<vmem>>, %arg8: memref<8x128xf32, #tpu.memory_space<vmem>>, %arg9: memref<8x32xf32, #tpu.memory_space<vmem>>, %arg10: memref<1x2xf32, #tpu.memory_space<vmem>>) attributes {dimension_semantics = [], scalar_prefetch = 0 : i64, scratch_operands = 0 : i64, tpu.core_type = #tpu.core_type<tc>} {
    %c0 = arith.constant 0 : index
    %c0_0 = arith.constant 0 : index
    %0 = vector.load %arg0[%c0, %c0_0] : memref<16x128xf32, #tpu.memory_space<vmem>>, vector<16x128xf32>
    %c0_1 = arith.constant 0 : index
    %c0_2 = arith.constant 0 : index
    %1 = vector.load %arg1[%c0_1, %c0_2] : memref<8x128xf32, #tpu.memory_space<vmem>>, vector<8x128xf32>
    %c0_3 = arith.constant 0 : index
    %c0_4 = arith.constant 0 : index
    %2 = vector.load %arg2[%c0_3, %c0_4] : memref<128x128xf32, #tpu.memory_space<vmem>>, vector<128x128xf32>
    %cst = arith.constant dense<0.000000e+00> : vector<16x128xf32>
    %3 = tpu.matmul %0, %2, %cst {dimension_numbers = #tpu.dot_dimension_numbers<[1], [0], [0], [1], [0, 0, 1, 1], [], []>} : vector<16x128xf32>, vector<128x128xf32>, vector<16x128xf32> -> vector<16x128xf32>
    %c0_5 = arith.constant 0 : index
    %c0_6 = arith.constant 0 : index
    %4 = vector.load %arg3[%c0_5, %c0_6] : memref<1x128xf32, #tpu.memory_space<vmem>>, vector<1x128xf32>
    %5 = vector.broadcast %4 : vector<1x128xf32> to vector<16x128xf32>
    %6 = arith.addf %3, %5 : vector<16x128xf32>
    %cst_7 = arith.constant 0.000000e+00 : f32
    %7 = vector.broadcast %cst_7 : f32 to vector<16x128xf32>
    %8 = arith.maximumf %6, %7 : vector<16x128xf32>
    %c0_8 = arith.constant 0 : index
    %c0_9 = arith.constant 0 : index
    %9 = vector.load %arg4[%c0_8, %c0_9] : memref<128x128xf32, #tpu.memory_space<vmem>>, vector<128x128xf32>
    %cst_10 = arith.constant dense<0.000000e+00> : vector<16x128xf32>
    %10 = tpu.matmul %8, %9, %cst_10 {dimension_numbers = #tpu.dot_dimension_numbers<[1], [0], [0], [1], [0, 0, 1, 1], [], []>} : vector<16x128xf32>, vector<128x128xf32>, vector<16x128xf32> -> vector<16x128xf32>
    %c0_11 = arith.constant 0 : index
    %c0_12 = arith.constant 0 : index
    %11 = vector.load %arg5[%c0_11, %c0_12] : memref<1x128xf32, #tpu.memory_space<vmem>>, vector<1x128xf32>
    %12 = vector.broadcast %11 : vector<1x128xf32> to vector<16x128xf32>
    %13 = arith.addf %10, %12 : vector<16x128xf32>
    %cst_13 = arith.constant 0.000000e+00 : f32
    %14 = vector.broadcast %cst_13 : f32 to vector<16x128xf32>
    %15 = arith.maximumf %13, %14 : vector<16x128xf32>
    %c0_14 = arith.constant 0 : index
    %c0_15 = arith.constant 0 : index
    %16 = vector.load %arg6[%c0_14, %c0_15] : memref<128x128xf32, #tpu.memory_space<vmem>>, vector<128x128xf32>
    %cst_16 = arith.constant dense<0.000000e+00> : vector<16x128xf32>
    %17 = tpu.matmul %15, %16, %cst_16 {dimension_numbers = #tpu.dot_dimension_numbers<[1], [0], [0], [1], [0, 0, 1, 1], [], []>} : vector<16x128xf32>, vector<128x128xf32>, vector<16x128xf32> -> vector<16x128xf32>
    %c0_17 = arith.constant 0 : index
    %c0_18 = arith.constant 0 : index
    %18 = vector.load %arg7[%c0_17, %c0_18] : memref<1x128xf32, #tpu.memory_space<vmem>>, vector<1x128xf32>
    %19 = vector.broadcast %18 : vector<1x128xf32> to vector<16x128xf32>
    %20 = arith.addf %17, %19 : vector<16x128xf32>
    %21 = vector.extract_strided_slice %20 {offsets = [0, 0], sizes = [8, 128], strides = [1, 1]} : vector<16x128xf32> to vector<8x128xf32>
    %c0_19 = arith.constant 0 : index
    %c0_20 = arith.constant 0 : index
    %22 = vector.load %arg8[%c0_19, %c0_20] : memref<8x128xf32, #tpu.memory_space<vmem>>, vector<8x128xf32>
    tpu.vector_store %arg8[%c0_19, %c0_20], %21 {strides = array<i32>} : memref<8x128xf32, #tpu.memory_space<vmem>>, vector<8x128xf32>,
    %cst_21 = arith.constant dense<0xFF800000> : vector<16xf32>
    %23 = vector.multi_reduction <maximumf>, %20, %cst_21 [1] : vector<16x128xf32> to vector<16xf32>
    %24 = vector.shape_cast %23 : vector<16xf32> to vector<16x1xf32>
    %25 = vector.broadcast %24 : vector<16x1xf32> to vector<16x128xf32>
    %26 = arith.subf %20, %25 : vector<16x128xf32>
    %27 = math.exp %26 : vector<16x128xf32>
    %cst_22 = arith.constant dense<0.000000e+00> : vector<16xf32>
    %28 = vector.multi_reduction <add>, %27, %cst_22 [1] : vector<16x128xf32> to vector<16xf32>
    %29 = vector.shape_cast %28 : vector<16xf32> to vector<16x1xf32>
    %30 = tpu.reciprocal %29 {approx = true} : vector<16x1xf32> -> vector<16x1xf32>
    %31 = vector.broadcast %30 : vector<16x1xf32> to vector<16x128xf32>
    %32 = arith.mulf %27, %31 : vector<16x128xf32>
    %33 = arith.mulf %32, %32 : vector<16x128xf32>
    %cst_23 = arith.constant dense<0.000000e+00> : vector<16xf32>
    %34 = vector.multi_reduction <add>, %33, %cst_23 [1] : vector<16x128xf32> to vector<16xf32>
    %35 = vector.shape_cast %34 : vector<16xf32> to vector<16x1xf32>
    %36 = math.rsqrt %35 : vector<16x1xf32>
    %37 = vector.broadcast %36 : vector<16x1xf32> to vector<16x128xf32>
    %38 = arith.mulf %32, %37 : vector<16x128xf32>
    %39 = vector.extract_strided_slice %38 {offsets = [0, 0], sizes = [8, 128], strides = [1, 1]} : vector<16x128xf32> to vector<8x128xf32>
    %40 = vector.extract_strided_slice %38 {offsets = [8, 0], sizes = [8, 128], strides = [1, 1]} : vector<16x128xf32> to vector<8x128xf32>
    %cst_24 = arith.constant dense<0.000000e+00> : vector<8x8xf32>
    %41 = tpu.matmul %39, %39, %cst_24 {dimension_numbers = #tpu.dot_dimension_numbers<[1], [1], [0], [0], [0, 0, 1, 0], [], []>} : vector<8x128xf32>, vector<8x128xf32>, vector<8x8xf32> -> vector<8x8xf32>
    %cst_25 = arith.constant dense<0.000000e+00> : vector<8x8xf32>
    %42 = tpu.matmul %40, %40, %cst_25 {dimension_numbers = #tpu.dot_dimension_numbers<[1], [1], [0], [0], [0, 0, 1, 0], [], []>} : vector<8x128xf32>, vector<8x128xf32>, vector<8x8xf32> -> vector<8x8xf32>
    %43 = arith.mulf %1, %1 : vector<8x128xf32>
    %cst_26 = arith.constant dense<0.000000e+00> : vector<8xf32>
    %44 = vector.multi_reduction <add>, %43, %cst_26 [1] : vector<8x128xf32> to vector<8xf32>
    %45 = vector.shape_cast %44 : vector<8xf32> to vector<8x1xf32>
    %46 = math.rsqrt %45 : vector<8x1xf32>
    %47 = vector.broadcast %46 : vector<8x1xf32> to vector<8x128xf32>
    %48 = arith.mulf %1, %47 : vector<8x128xf32>
    %cst_27 = arith.constant dense<0.000000e+00> : vector<8x8xf32>
    %49 = tpu.matmul %48, %48, %cst_27 {dimension_numbers = #tpu.dot_dimension_numbers<[1], [1], [0], [0], [0, 0, 1, 0], [], []>} : vector<8x128xf32>, vector<8x128xf32>, vector<8x8xf32> -> vector<8x8xf32>
    %cst_28 = arith.constant 0.899999976 : f32
    %50 = vector.broadcast %cst_28 : f32 to vector<8x8xf32>
    %51 = arith.cmpf ogt, %42, %50 : vector<8x8xf32>
    %52 = arith.extui %51 : vector<8x8xi1> to vector<8x8xi32>
    %53 = arith.sitofp %52 : vector<8x8xi32> to vector<8x8xf32>
    %54 = tpu.concatenate %41, %42, %49, %53 in 1 : vector<8x8xf32>, vector<8x8xf32>, vector<8x8xf32>, vector<8x8xf32> -> vector<8x32xf32>
    %c0_29 = arith.constant 0 : index
    %c0_30 = arith.constant 0 : index
    %55 = vector.load %arg9[%c0_29, %c0_30] : memref<8x32xf32, #tpu.memory_space<vmem>>, vector<8x32xf32>
    tpu.vector_store %arg9[%c0_29, %c0_30], %54 {strides = array<i32>} : memref<8x32xf32, #tpu.memory_space<vmem>>, vector<8x32xf32>,
    %56 = vector.extract_strided_slice %32 {offsets = [8, 0], sizes = [8, 128], strides = [1, 1]} : vector<16x128xf32> to vector<8x128xf32>
    %cst_31 = arith.constant dense<0xFF800000> : vector<8xf32>
    %57 = vector.multi_reduction <maximumf>, %56, %cst_31 [1] : vector<8x128xf32> to vector<8xf32>
    %58 = vector.shape_cast %57 : vector<8xf32> to vector<8x1xf32>
    %cst_32 = arith.constant 7.500000e-01 : f32
    %59 = vector.broadcast %cst_32 : f32 to vector<8x1xf32>
    %60 = arith.cmpf ogt, %58, %59 : vector<8x1xf32>
    %61 = arith.extui %60 : vector<8x1xi1> to vector<8x1xi32>
    %62 = arith.sitofp %61 : vector<8x1xi32> to vector<8x1xf32>
    %63 = vector.broadcast %58 : vector<8x1xf32> to vector<8x128xf32>
    %64 = arith.cmpf oge, %56, %63 : vector<8x128xf32>
    %65 = arith.extui %64 : vector<8x128xi1> to vector<8x128xi32>
    %66 = arith.sitofp %65 : vector<8x128xi32> to vector<8x128xf32>
    %67 = vector.broadcast %62 : vector<8x1xf32> to vector<8x128xf32>
    %68 = arith.mulf %66, %67 : vector<8x128xf32>
    %cst_33 = arith.constant dense<0.000000e+00> : vector<16x16xf32>
    %69 = tpu.matmul %8, %8, %cst_33 {dimension_numbers = #tpu.dot_dimension_numbers<[1], [1], [0], [0], [0, 0, 1, 0], [], []>} : vector<16x128xf32>, vector<16x128xf32>, vector<16x16xf32> -> vector<16x16xf32>
    %70 = tpu.iota {dimensions = array<i32: 0>} : vector<16x16xi32>
    %71 = tpu.iota {dimensions = array<i32: 1>} : vector<16x16xi32>
    %72 = arith.cmpi eq, %70, %71 : vector<16x16xi32>
    %73 = arith.extui %72 : vector<16x16xi1> to vector<16x16xi32>
    %74 = arith.sitofp %73 : vector<16x16xi32> to vector<16x16xf32>
    %75 = arith.mulf %74, %69 : vector<16x16xf32>
    %cst_34 = arith.constant dense<0.000000e+00> : vector<16xf32>
    %76 = vector.multi_reduction <add>, %75, %cst_34 [0] : vector<16x16xf32> to vector<16xf32>
    %77 = vector.shape_cast %76 : vector<16xf32> to vector<1x16xf32>
    %78 = arith.mulf %74, %69 : vector<16x16xf32>
    %cst_35 = arith.constant dense<0.000000e+00> : vector<16xf32>
    %79 = vector.multi_reduction <add>, %78, %cst_35 [1] : vector<16x16xf32> to vector<16xf32>
    %80 = vector.shape_cast %79 : vector<16xf32> to vector<16x1xf32>
    %81 = vector.broadcast %80 : vector<16x1xf32> to vector<16x16xf32>
    %82 = vector.broadcast %77 : vector<1x16xf32> to vector<16x16xf32>
    %83 = arith.addf %81, %82 : vector<16x16xf32>
    %cst_36 = arith.constant 2.000000e+00 : f32
    %84 = vector.broadcast %cst_36 : f32 to vector<16x16xf32>
    %85 = arith.mulf %84, %69 : vector<16x16xf32>
    %86 = arith.subf %83, %85 : vector<16x16xf32>
    %cst_37 = arith.constant 0.000000e+00 : f32
    %87 = vector.broadcast %cst_37 : f32 to vector<16x16xf32>
    %88 = arith.maximumf %86, %87 : vector<16x16xf32>
    %cst_38 = arith.constant -0.00617283955 : f32
    %89 = vector.broadcast %cst_38 : f32 to vector<16x16xf32>
    %90 = arith.mulf %89, %88 : vector<16x16xf32>
    %91 = math.exp %90 : vector<16x16xf32>
    %cst_39 = arith.constant -5.000000e-01 : f32
    %92 = vector.broadcast %cst_39 : f32 to vector<16x16xf32>
    %93 = arith.mulf %92, %88 : vector<16x16xf32>
    %94 = math.exp %93 : vector<16x16xf32>
    %c8_i32 = arith.constant 8 : i32
    %95 = vector.broadcast %c8_i32 : i32 to vector<16x16xi32>
    %96 = arith.cmpi slt, %70, %95 : vector<16x16xi32>
    %c8_i32_40 = arith.constant 8 : i32
    %97 = vector.broadcast %c8_i32_40 : i32 to vector<16x16xi32>
    %98 = arith.cmpi slt, %71, %97 : vector<16x16xi32>
    %99 = arith.andi %96, %98 : vector<16x16xi1>
    %100 = arith.extui %99 : vector<16x16xi1> to vector<16x16xi32>
    %101 = arith.sitofp %100 : vector<16x16xi32> to vector<16x16xf32>
    %cst_41 = arith.constant dense<true> : vector<16x16xi1>
    %102 = arith.xori %96, %cst_41 : vector<16x16xi1>
    %cst_42 = arith.constant dense<true> : vector<16x16xi1>
    %103 = arith.xori %98, %cst_42 : vector<16x16xi1>
    %104 = arith.andi %102, %103 : vector<16x16xi1>
    %105 = arith.extui %104 : vector<16x16xi1> to vector<16x16xi32>
    %106 = arith.sitofp %105 : vector<16x16xi32> to vector<16x16xf32>
    %cst_43 = arith.constant dense<true> : vector<16x16xi1>
    %107 = arith.xori %98, %cst_43 : vector<16x16xi1>
    %108 = arith.andi %96, %107 : vector<16x16xi1>
    %109 = arith.extui %108 : vector<16x16xi1> to vector<16x16xi32>
    %110 = arith.sitofp %109 : vector<16x16xi32> to vector<16x16xf32>
    %111 = arith.mulf %91, %101 : vector<16x16xf32>
    %112 = vector.shape_cast %111 : vector<16x16xf32> to vector<1x16x16xf32>
    %cst_44 = arith.constant dense<0.000000e+00> : vector<1xf32>
    %113 = vector.multi_reduction <add>, %112, %cst_44 [1, 2] : vector<1x16x16xf32> to vector<1xf32>
    %114 = vector.shape_cast %113 : vector<1xf32> to vector<1x1x1xf32>
    %115 = vector.extract %114[0, 0, 0] : f32 from vector<1x1x1xf32>
    %cst_45 = arith.constant 1.562500e-02 : f32
    %116 = arith.mulf %115, %cst_45 : f32
    %117 = arith.mulf %91, %106 : vector<16x16xf32>
    %118 = vector.shape_cast %117 : vector<16x16xf32> to vector<1x16x16xf32>
    %cst_46 = arith.constant dense<0.000000e+00> : vector<1xf32>
    %119 = vector.multi_reduction <add>, %118, %cst_46 [1, 2] : vector<1x16x16xf32> to vector<1xf32>
    %120 = vector.shape_cast %119 : vector<1xf32> to vector<1x1x1xf32>
    %121 = vector.extract %120[0, 0, 0] : f32 from vector<1x1x1xf32>
    %cst_47 = arith.constant 1.562500e-02 : f32
    %122 = arith.mulf %121, %cst_47 : f32
    %123 = arith.addf %116, %122 : f32
    %124 = arith.mulf %91, %110 : vector<16x16xf32>
    %125 = vector.shape_cast %124 : vector<16x16xf32> to vector<1x16x16xf32>
    %cst_48 = arith.constant dense<0.000000e+00> : vector<1xf32>
    %126 = vector.multi_reduction <add>, %125, %cst_48 [1, 2] : vector<1x16x16xf32> to vector<1xf32>
    %127 = vector.shape_cast %126 : vector<1xf32> to vector<1x1x1xf32>
    %128 = vector.extract %127[0, 0, 0] : f32 from vector<1x1x1xf32>
    %cst_49 = arith.constant 2.000000e+00 : f32
    %129 = arith.mulf %cst_49, %128 : f32
    %cst_50 = arith.constant 1.562500e-02 : f32
    %130 = arith.mulf %129, %cst_50 : f32
    %131 = arith.subf %123, %130 : f32
    %cst_51 = arith.constant 0.000000e+00 : f32
    %132 = vector.broadcast %cst_51 : f32 to vector<8x128xf32>
    %133 = tpu.concatenate %1, %132 in 0 : vector<8x128xf32>, vector<8x128xf32> -> vector<16x128xf32>
    %cst_52 = arith.constant 0.000000e+00 : f32
    %134 = vector.broadcast %cst_52 : f32 to vector<8x128xf32>
    %135 = tpu.concatenate %134, %68 in 0 : vector<8x128xf32>, vector<8x128xf32> -> vector<16x128xf32>
    %cst_53 = arith.constant dense<0.000000e+00> : vector<16x128xf32>
    %136 = tpu.matmul %94, %133, %cst_53 {dimension_numbers = #tpu.dot_dimension_numbers<[1], [0], [0], [1], [0, 0, 1, 1], [], []>} : vector<16x16xf32>, vector<16x128xf32>, vector<16x128xf32> -> vector<16x128xf32>
    %cst_54 = arith.constant dense<0.000000e+00> : vector<16x128xf32>
    %137 = tpu.matmul %94, %135, %cst_54 {dimension_numbers = #tpu.dot_dimension_numbers<[1], [0], [0], [1], [0, 0, 1, 1], [], []>} : vector<16x16xf32>, vector<16x128xf32>, vector<16x128xf32> -> vector<16x128xf32>
    %138 = arith.mulf %133, %136 : vector<16x128xf32>
    %cst_55 = arith.constant dense<0.000000e+00> : vector<128xf32>
    %139 = vector.multi_reduction <add>, %138, %cst_55 [0] : vector<16x128xf32> to vector<128xf32>
    %140 = vector.shape_cast %139 : vector<128xf32> to vector<1x128xf32>
    %141 = arith.mulf %133, %137 : vector<16x128xf32>
    %cst_56 = arith.constant dense<0.000000e+00> : vector<128xf32>
    %142 = vector.multi_reduction <add>, %141, %cst_56 [0] : vector<16x128xf32> to vector<128xf32>
    %143 = vector.shape_cast %142 : vector<128xf32> to vector<1x128xf32>
    %144 = arith.mulf %135, %137 : vector<16x128xf32>
    %cst_57 = arith.constant dense<0.000000e+00> : vector<128xf32>
    %145 = vector.multi_reduction <add>, %144, %cst_57 [0] : vector<16x128xf32> to vector<128xf32>
    %146 = vector.shape_cast %145 : vector<128xf32> to vector<1x128xf32>
    %cst_58 = arith.constant dense<0.000000e+00> : vector<128xf32>
    %147 = vector.multi_reduction <add>, %133, %cst_58 [0] : vector<16x128xf32> to vector<128xf32>
    %148 = vector.shape_cast %147 : vector<128xf32> to vector<1x128xf32>
    %cst_59 = arith.constant dense<0.000000e+00> : vector<128xf32>
    %149 = vector.multi_reduction <add>, %135, %cst_59 [0] : vector<16x128xf32> to vector<128xf32>
    %150 = vector.shape_cast %149 : vector<128xf32> to vector<1x128xf32>
    %cst_60 = arith.constant 0.000000e+00 : f32
    %151 = vector.broadcast %cst_60 : f32 to vector<1x128xf32>
    %152 = arith.cmpf ogt, %148, %151 : vector<1x128xf32>
    %cst_61 = arith.constant 0.000000e+00 : f32
    %153 = vector.broadcast %cst_61 : f32 to vector<1x128xf32>
    %154 = arith.cmpf ogt, %150, %153 : vector<1x128xf32>
    %155 = arith.andi %152, %154 : vector<1x128xi1>
    %cst_62 = arith.constant 1.000000e+00 : f32
    %156 = vector.broadcast %cst_62 : f32 to vector<1x128xf32>
    %157 = arith.maximumf %148, %156 : vector<1x128xf32>
    %cst_63 = arith.constant 1.000000e+00 : f32
    %158 = vector.broadcast %cst_63 : f32 to vector<1x128xf32>
    %159 = arith.maximumf %150, %158 : vector<1x128xf32>
    %160 = arith.mulf %157, %157 : vector<1x128xf32>
    %161 = arith.divf %140, %160 : vector<1x128xf32>
    %162 = arith.mulf %159, %159 : vector<1x128xf32>
    %163 = arith.divf %146, %162 : vector<1x128xf32>
    %164 = arith.addf %161, %163 : vector<1x128xf32>
    %cst_64 = arith.constant 2.000000e+00 : f32
    %165 = vector.broadcast %cst_64 : f32 to vector<1x128xf32>
    %166 = arith.mulf %165, %143 : vector<1x128xf32>
    %167 = arith.mulf %157, %159 : vector<1x128xf32>
    %168 = arith.divf %166, %167 : vector<1x128xf32>
    %169 = arith.subf %164, %168 : vector<1x128xf32>
    %cst_65 = arith.constant 0.000000e+00 : f32
    %170 = vector.broadcast %cst_65 : f32 to vector<1x128xf32>
    %171 = arith.select %155, %169, %170 : vector<1x128xi1>, vector<1x128xf32>
    %172 = arith.extui %155 : vector<1x128xi1> to vector<1x128xi32>
    %173 = arith.sitofp %172 : vector<1x128xi32> to vector<1x128xf32>
    %174 = vector.shape_cast %173 : vector<1x128xf32> to vector<1x1x128xf32>
    %cst_66 = arith.constant dense<0.000000e+00> : vector<1xf32>
    %175 = vector.multi_reduction <add>, %174, %cst_66 [1, 2] : vector<1x1x128xf32> to vector<1xf32>
    %176 = vector.shape_cast %175 : vector<1xf32> to vector<1x1x1xf32>
    %177 = vector.extract %176[0, 0, 0] : f32 from vector<1x1x1xf32>
    %178 = vector.shape_cast %171 : vector<1x128xf32> to vector<1x1x128xf32>
    %cst_67 = arith.constant dense<0.000000e+00> : vector<1xf32>
    %179 = vector.multi_reduction <add>, %178, %cst_67 [1, 2] : vector<1x1x128xf32> to vector<1xf32>
    %180 = vector.shape_cast %179 : vector<1xf32> to vector<1x1x1xf32>
    %181 = vector.extract %180[0, 0, 0] : f32 from vector<1x1x1xf32>
    %cst_68 = arith.constant 1.000000e+00 : f32
    %182 = arith.maximumf %177, %cst_68 : f32
    %183 = arith.divf %181, %182 : f32
    %184 = tpu.iota {dimensions = array<i32: 1>} : vector<1x2xi32>
    %c0_i32 = arith.constant 0 : i32
    %185 = vector.broadcast %c0_i32 : i32 to vector<1x2xi32>
    %186 = arith.cmpi eq, %184, %185 : vector<1x2xi32>
    %187 = vector.broadcast %131 : f32 to vector<1x2xf32>
    %188 = vector.broadcast %183 : f32 to vector<1x2xf32>
    %189 = arith.select %186, %187, %188 : vector<1x2xi1>, vector<1x2xf32>
    %c0_69 = arith.constant 0 : index
    %c0_70 = arith.constant 0 : index
    %190 = vector.load %arg10[%c0_69, %c0_70] : memref<1x2xf32, #tpu.memory_space<vmem>>, vector<1x2xf32>
    tpu.vector_store %arg10[%c0_69, %c0_70], %189 {strides = array<i32>} : memref<1x2xf32, #tpu.memory_space<vmem>>, vector<1x2xf32>,
    return
  }
}

</mosaic_0001>

<llo_original>
// kernel: transfer_net_forward.1
$region0: #{transfer_net_forward.1}
  #allocation0 [shape = 'u32[]', space=smem, size = 0x4, offset = 0x4, fixed_abs, tag = 'smem constant byte address 0x4 - core index']
  #allocation1 [shape = 'u32[144,128]{1,0:T(1,128)}', space=vmem, size = 0x12000, scoped, tag = 'internal scratch']
  %s0 = inlined_call_operand.vmem [shape: f32[16,128], index: 0, kind: input, shape index: {}]
  %s1 = inlined_call_operand.vmem [shape: f32[8,128], index: 1, kind: input, shape index: {}]
  %s2 = inlined_call_operand.hbm [shape: f32[128,128], index: 2, kind: input, shape index: {}]
  %s3 = inlined_call_operand.vmem [shape: f32[1,128], index: 3, kind: input, shape index: {}]
  %s4 = inlined_call_operand.hbm [shape: f32[128,128], index: 4, kind: input, shape index: {}]
  %s5 = inlined_call_operand.vmem [shape: f32[1,128], index: 5, kind: input, shape index: {}]
  %s6 = inlined_call_operand.hbm [shape: f32[128,128], index: 6, kind: input, shape index: {}]
  %s7 = inlined_call_operand.vmem [shape: f32[1,128], index: 7, kind: input, shape index: {}]
  %s8 = inlined_call_operand.vmem [shape: f32[8,128], index: 8, kind: output, shape index: {0}]
  %s9 = inlined_call_operand.vmem [shape: f32[8,32], index: 9, kind: output, shape index: {1}]
  %s10 = inlined_call_operand.vmem [shape: f32[1,2], index: 10, kind: output, shape index: {2}]
  %11 = xla_tuple %s8, %s9, %s10
  %s12 = sld [smem:[#allocation0]]
  $region70: #{transfer_net_forward.1} parent=0
    _
  %s14 = ssub.s32 1, %s12
  %s15 = scalar_select 0, %s14, %s12
  $region1: #{transfer_net_forward.1} parent=0
    #allocation2 [shape = 'u8[65536]{0}', space=vmem, size = 0x10000, scoped, tag = 'input window, operand 2, single buffered']
    #allocation3 [shape = 's32[1]{0}', space=sflag, size = 0x4, scoped, tag = 'scoped memory for transfer_net_forward.1']
    #allocation4 [shape = 'u8[65536]{0}', space=vmem, size = 0x10000, scoped, tag = 'input window, operand 4, single buffered']
    #allocation5 [shape = 's32[1]{0}', space=sflag, size = 0x4, scoped, tag = 'scoped memory for transfer_net_forward.1']
    #allocation6 [shape = 'u8[65536]{0}', space=vmem, size = 0x10000, scoped, tag = 'input window, operand 6, single buffered']
    %16 = vsyncpa [#allocation3], 0
    %17 = vsyncpa [#allocation5], 0
    // Predicated region
    $region2: #{transfer_net_forward.1} parent=1 // pred_check
      _
    $region3: #{transfer_net_forward.1} parent=1 // pred_check_branch
      %19 = sbr.rel (0) target = $region5
    $region4: #{transfer_net_forward.1} parent=1 // pred_region
      _
    $region5: #{transfer_net_forward.1} parent=1 // pred_fallthru
      _
    // Predicated region
    $region6: #{transfer_net_forward.1} parent=1 // pred_check
      _
    $region7: #{transfer_net_forward.1} parent=1 // pred_check_branch
      %21 = sbr.rel (0) target = $region9
    $region8: #{transfer_net_forward.1} parent=1 // pred_region
      _
    $region9: #{transfer_net_forward.1} parent=1 // pred_fallthru
      _
    // Predicated region
    $region10: #{transfer_net_forward.1} parent=1 // pred_check
      _
    $region11: #{transfer_net_forward.1} parent=1 // pred_check_branch
      %23 = sbr.rel (0) target = $region13
    $region12: #{transfer_net_forward.1} parent=1 // pred_region
      %s25 = ssub.s32 2048, 2048
      %26 = vsyncadd [#allocation3], %s25
      %s27 = sshll.u32 [#allocation2], 4
      %s28 = int_to_ptr.vmem [resolvable:$true] %s27
      %33 = dma.hbm_to_vmem [thread:$0]  %s2, 2048, %s28, [#allocation3], 128, 128, 8
    $region13: #{transfer_net_forward.1} parent=1 // pred_fallthru
      _
    // Predicated region
    $region14: #{transfer_net_forward.1} parent=1 // pred_check
      _
    $region15: #{transfer_net_forward.1} parent=1 // pred_check_branch
      %35 = sbr.rel (0) target = $region17
    $region16: #{transfer_net_forward.1} parent=1 // pred_region
      _
    $region17: #{transfer_net_forward.1} parent=1 // pred_fallthru
      _
    // Predicated region
    $region18: #{transfer_net_forward.1} parent=1 // pred_check
      _
    $region19: #{transfer_net_forward.1} parent=1 // pred_check_branch
      %37 = sbr.rel (0) target = $region21
    $region20: #{transfer_net_forward.1} parent=1 // pred_region
      %s39 = ssub.s32 2048, 2048
      %40 = vsyncadd [#allocation5], %s39
      %s41 = sshll.u32 [#allocation4], 4
      %s42 = int_to_ptr.vmem [resolvable:$true] %s41
      %47 = dma.hbm_to_vmem [thread:$0]  %s4, 2048, %s42, [#allocation5], 128, 128, 8
    $region21: #{transfer_net_forward.1} parent=1 // pred_fallthru
      _
    // Predicated region
    $region22: #{transfer_net_forward.1} parent=1 // pred_check
      _
    $region23: #{transfer_net_forward.1} parent=1 // pred_check_branch
      %49 = sbr.rel (0) target = $region25
    $region24: #{transfer_net_forward.1} parent=1 // pred_region
      _
    $region25: #{transfer_net_forward.1} parent=1 // pred_fallthru
      _
    // Predicated region
    $region26: #{transfer_net_forward.1} parent=1 // pred_check
      _
    $region27: #{transfer_net_forward.1} parent=1 // pred_check_branch
      %51 = sbr.rel (0) target = $region29
    $region28: #{transfer_net_forward.1} parent=1 // pred_region
      %s53 = ssub.s32 2048, 2048
      %54 = vsyncadd [#allocation5], %s53
      %s55 = sshll.u32 [#allocation6], 4
      %s56 = int_to_ptr.vmem [resolvable:$true] %s55
      %61 = dma.hbm_to_vmem [thread:$0]  %s6, 2048, %s56, [#allocation5], 128, 128, 8
    $region29: #{transfer_net_forward.1} parent=1 // pred_fallthru
      _
    // Predicated region
    $region30: #{transfer_net_forward.1} parent=1 // pred_check
      _
    $region31: #{transfer_net_forward.1} parent=1 // pred_check_branch
      %63 = sbr.rel (0) target = $region33
    $region32: #{transfer_net_forward.1} parent=1 // pred_region
      _
    $region33: #{transfer_net_forward.1} parent=1 // pred_fallthru
      _
    // Predicated region
    $region34: #{transfer_net_forward.1} parent=1 // pred_check
      _
    $region35: #{transfer_net_forward.1} parent=1 // pred_check_branch
      %65 = sbr.rel (0) target = $region37
    $region36: #{transfer_net_forward.1} parent=1 // pred_region
      %66 = dma.done [#allocation3], 2048
    $region37: #{transfer_net_forward.1} parent=1 // pred_fallthru
      _
    // Predicated region
    $region38: #{transfer_net_forward.1} parent=1 // pred_check
      _
    $region39: #{transfer_net_forward.1} parent=1 // pred_check_branch
      %68 = sbr.rel (0) target = $region41
    $region40: #{transfer_net_forward.1} parent=1 // pred_region
      %69 = dma.done [#allocation5], 2048
    $region41: #{transfer_net_forward.1} parent=1 // pred_fallthru
      _
    // Predicated region
    $region42: #{transfer_net_forward.1} parent=1 // pred_check
      _
    $region43: #{transfer_net_forward.1} parent=1 // pred_check_branch
      %71 = sbr.rel (0) target = $region45
    $region44: #{transfer_net_forward.1} parent=1 // pred_region
      %72 = dma.done [#allocation5], 2048
    $region45: #{transfer_net_forward.1} parent=1 // pred_fallthru
      _
    %v73 = vld [vmem:[%s0] sm:$0xff]
    %v74 = vld [vmem:[%s0 + $0x8] sm:$0xff]
    %v75 = vld [vmem:[%s1] sm:$0xff]
    %v76 = vld [vmem:[#allocation2] sm:$0xff]
    %v77 = vld [vmem:[#allocation2 + $0x8] sm:$0xff]
    %v78 = vld [vmem:[#allocation2 + $0x10] sm:$0xff]
    %v79 = vld [vmem:[#allocation2 + $0x18] sm:$0xff]
    %v80 = vld [vmem:[#allocation2 + $0x20] sm:$0xff]
    %v81 = vld [vmem:[#allocation2 + $0x28] sm:$0xff]
    %v82 = vld [vmem:[#allocation2 + $0x30] sm:$0xff]
    %v83 = vld [vmem:[#allocation2 + $0x38] sm:$0xff]
    %v84 = vld [vmem:[#allocation2 + $0x40] sm:$0xff]
    %v85 = vld [vmem:[#allocation2 + $0x48] sm:$0xff]
    %v86 = vld [vmem:[#allocation2 + $0x50] sm:$0xff]
    %v87 = vld [vmem:[#allocation2 + $0x58] sm:$0xff]
    %v88 = vld [vmem:[#allocation2 + $0x60] sm:$0xff]
    %v89 = vld [vmem:[#allocation2 + $0x68] sm:$0xff]
    %v90 = vld [vmem:[#allocation2 + $0x70] sm:$0xff]
    %v91 = vld [vmem:[#allocation2 + $0x78] sm:$0xff]
    %v92 = vld [vmem:[%s3] sm:$0x1]
    %v94 = vlaneseq
    %v95 = vshrl.u32 %v94, 7
    %v96 = vsub.s32 0, %v95
    %v97 = vrot.slane %v92, %v96
    %99 = vmatprep.subr.mxu0 0.0
    %100 = vmatpush1.msra.mxu0 %v76
    %101 = vmatprep.subr.mxu0 0.0
    %102 = vmatpush1.msra.mxu0 %v77
    %103 = vmatprep.subr.mxu0 0.0
    %104 = vmatpush1.msra.mxu0 %v78
    %105 = vmatprep.subr.mxu0 0.0
    %106 = vmatpush1.msra.mxu0 %v79
    %107 = vmatprep.subr.mxu0 0.0
    %108 = vmatpush1.msra.mxu0 %v80
    %109 = vmatprep.subr.mxu0 0.0
    %110 = vmatpush1.msra.mxu0 %v81
    %111 = vmatprep.subr.mxu0 0.0
    %112 = vmatpush1.msra.mxu0 %v82
    %113 = vmatprep.subr.mxu0 0.0
    %114 = vmatpush1.msra.mxu0 %v83
    %115 = vmatprep.subr.mxu0 0.0
    %116 = vmatpush1.msra.mxu0 %v84
    %117 = vmatprep.subr.mxu0 0.0
    %118 = vmatpush1.msra.mxu0 %v85
    %119 = vmatprep.subr.mxu0 0.0
    %120 = vmatpush1.msra.mxu0 %v86
    %121 = vmatprep.subr.mxu0 0.0
    %122 = vmatpush1.msra.mxu0 %v87
    %123 = vmatprep.subr.mxu0 0.0
    %124 = vmatpush1.msra.mxu0 %v88
    %125 = vmatprep.subr.mxu0 0.0
    %126 = vmatpush1.msra.mxu0 %v89
    %127 = vmatprep.subr.mxu0 0.0
    %128 = vmatpush1.msra.mxu0 %v90
    %129 = vmatprep.subr.mxu0 0.0
    %130 = vmatpush1.msra.mxu0 %v91
    %131 = vmatprep.subr.mxu0 0.0
    %132 = vmatpush1.msra.mxu0 0.0
    %133 = vmatprep.subr.mxu0 0.0
    %134 = vmatpush1.msra.mxu0 0.0
    %135 = vmatprep.subr.mxu0 0.0
    %136 = vmatpush1.msra.mxu0 0.0
    %137 = vmatprep.subr.mxu0 0.0
    %138 = vmatpush1.msra.mxu0 0.0
    %139 = vmatprep.subr.mxu0 0.0
    %140 = vmatpush1.msra.mxu0 0.0
    %141 = vmatprep.subr.mxu0 0.0
    %142 = vmatpush1.msra.mxu0 0.0
    %143 = vmatprep.subr.mxu0 0.0
    %144 = vmatpush1.msra.mxu0 0.0
    %145 = vmatprep.subr.mxu0 0.0
    %146 = vmatpush1.msra.mxu0 0.0
    %147 = vmatprep.subr.mxu0 0.0
    %148 = vmatpush1.msra.mxu0 0.0
    %149 = vmatprep.subr.mxu0 0.0
    %150 = vmatpush1.msra.mxu0 0.0
    %151 = vmatprep.subr.mxu0 0.0
    %152 = vmatpush1.msra.mxu0 0.0
    %153 = vmatprep.subr.mxu0 0.0
    %154 = vmatpush1.msra.mxu0 0.0
    %155 = vmatprep.subr.mxu0 0.0
    %156 = vmatpush1.msra.mxu0 0.0
    %157 = vmatprep.subr.mxu0 0.0
    %158 = vmatpush1.msra.mxu0 0.0
    %159 = vmatprep.subr.mxu0 0.0
    %160 = vmatpush1.msra.mxu0 0.0
    %161 = vmatprep.subr.mxu0 0.0
    %162 = vmatpush1.msra.mxu0 0.0
    %163 = vmatprep.mubr.f32.mxu0 0.0
    %164 = vmatmul.mubr.f32.gmra.mrb[0].mxu0 %v73
    %v165 = vpop.f32.mrb[0].mxu0
    %v166 = vadd.f32 %v97, %v165
    %v167 = vpop.f32.mrb[0].mxu0
    %168 = vmatprep.mubr.f32.mxu0 0.0
    %169 = vmatmul.mubr.f32.gmra.mrb[0].mxu0 %v74
    %v170 = vpop.f32.mrb[0].mxu0
    %v171 = vadd.f32 %v97, %v170
    %v172 = vpop.f32.mrb[0].mxu0
    %173 = vdwg.mxu0
    %v174 = vmax.f32 %v166, 0.0
    %v175 = vmax.f32 %v171, 0.0
    %v176 = vld [vmem:[#allocation4] sm:$0xff]
    %v177 = vld [vmem:[#allocation4 + $0x8] sm:$0xff]
    %v178 = vld [vmem:[#allocation4 + $0x10] sm:$0xff]
    %v179 = vld [vmem:[#allocation4 + $0x18] sm:$0xff]
    %v180 = vld [vmem:[#allocation4 + $0x20] sm:$0xff]
    %v181 = vld [vmem:[#allocation4 + $0x28] sm:$0xff]
    %v182 = vld [vmem:[#allocation4 + $0x30] sm:$0xff]
    %v183 = vld [vmem:[#allocation4 + $0x38] sm:$0xff]
    %v184 = vld [vmem:[#allocation4 + $0x40] sm:$0xff]
    %v185 = vld [vmem:[#allocation4 + $0x48] sm:$0xff]
    %v186 = vld [vmem:[#allocation4 + $0x50] sm:$0xff]
    %v187 = vld [vmem:[#allocation4 + $0x58] sm:$0xff]
    %v188 = vld [vmem:[#allocation4 + $0x60] sm:$0xff]
    %v189 = vld [vmem:[#allocation4 + $0x68] sm:$0xff]
    %v190 = vld [vmem:[#allocation4 + $0x70] sm:$0xff]
    %v191 = vld [vmem:[#allocation4 + $0x78] sm:$0xff]
    %v192 = vld [vmem:[%s5] sm:$0x1]
    %v194 = vlaneseq
    %v195 = vshrl.u32 %v194, 7
    %v196 = vsub.s32 0, %v195
    %v197 = vrot.slane %v192, %v196
    %199 = vmatprep.subr.mxu0 0.0
    %200 = vmatpush1.msra.mxu0 %v176
    %201 = vmatprep.subr.mxu0 0.0
    %202 = vmatpush1.msra.mxu0 %v177
    %203 = vmatprep.subr.mxu0 0.0
    %204 = vmatpush1.msra.mxu0 %v178
    %205 = vmatprep.subr.mxu0 0.0
    %206 = vmatpush1.msra.mxu0 %v179
    %207 = vmatprep.subr.mxu0 0.0
    %208 = vmatpush1.msra.mxu0 %v180
    %209 = vmatprep.subr.mxu0 0.0
    %210 = vmatpush1.msra.mxu0 %v181
    %211 = vmatprep.subr.mxu0 0.0
    %212 = vmatpush1.msra.mxu0 %v182
    %213 = vmatprep.subr.mxu0 0.0
    %214 = vmatpush1.msra.mxu0 %v183
    %215 = vmatprep.subr.mxu0 0.0
    %216 = vmatpush1.msra.mxu0 %v184
    %217 = vmatprep.subr.mxu0 0.0
    %218 = vmatpush1.msra.mxu0 %v185
    %219 = vmatprep.subr.mxu0 0.0
    %220 = vmatpush1.msra.mxu0 %v186
    %221 = vmatprep.subr.mxu0 0.0
    %222 = vmatpush1.msra.mxu0 %v187
    %223 = vmatprep.subr.mxu0 0.0
    %224 = vmatpush1.msra.mxu0 %v188
    %225 = vmatprep.subr.mxu0 0.0
    %226 = vmatpush1.msra.mxu0 %v189
    %227 = vmatprep.subr.mxu0 0.0
    %228 = vmatpush1.msra.mxu0 %v190
    %229 = vmatprep.subr.mxu0 0.0
    %230 = vmatpush1.msra.mxu0 %v191
    %231 = vmatprep.subr.mxu0 0.0
    %232 = vmatpush1.msra.mxu0 0.0
    %233 = vmatprep.subr.mxu0 0.0
    %234 = vmatpush1.msra.mxu0 0.0
    %235 = vmatprep.subr.mxu0 0.0
    %236 = vmatpush1.msra.mxu0 0.0
    %237 = vmatprep.subr.mxu0 0.0
    %238 = vmatpush1.msra.mxu0 0.0
    %239 = vmatprep.subr.mxu0 0.0
    %240 = vmatpush1.msra.mxu0 0.0
    %241 = vmatprep.subr.mxu0 0.0
    %242 = vmatpush1.msra.mxu0 0.0
    %243 = vmatprep.subr.mxu0 0.0
    %244 = vmatpush1.msra.mxu0 0.0
    %245 = vmatprep.subr.mxu0 0.0
    %246 = vmatpush1.msra.mxu0 0.0
    %247 = vmatprep.subr.mxu0 0.0
    %248 = vmatpush1.msra.mxu0 0.0
    %249 = vmatprep.subr.mxu0 0.0
    %250 = vmatpush1.msra.mxu0 0.0
    %251 = vmatprep.subr.mxu0 0.0
    %252 = vmatpush1.msra.mxu0 0.0
    %253 = vmatprep.subr.mxu0 0.0
    %254 = vmatpush1.msra.mxu0 0.0
    %255 = vmatprep.subr.mxu0 0.0
    %256 = vmatpush1.msra.mxu0 0.0
    %257 = vmatprep.subr.mxu0 0.0
    %258 = vmatpush1.msra.mxu0 0.0
    %259 = vmatprep.subr.mxu0 0.0
    %260 = vmatpush1.msra.mxu0 0.0
    %261 = vmatprep.subr.mxu0 0.0
    %262 = vmatpush1.msra.mxu0 0.0
    %263 = vmatprep.mubr.f32.mxu0 0.0
    %264 = vmatmul.mubr.f32.gmra.mrb[0].mxu0 %v174
    %v265 = vpop.f32.mrb[0].mxu0
    %v266 = vadd.f32 %v197, %v265
    %v267 = vpop.f32.mrb[0].mxu0
    %268 = vmatprep.mubr.f32.mxu0 0.0
    %269 = vmatmul.mubr.f32.gmra.mrb[0].mxu0 %v175
    %v270 = vpop.f32.mrb[0].mxu0
    %v271 = vadd.f32 %v197, %v270
    %v272 = vpop.f32.mrb[0].mxu0
    %273 = vdwg.mxu0
    %v274 = vmax.f32 %v266, 0.0
    %v275 = vmax.f32 %v271, 0.0
    %v276 = vld [vmem:[#allocation6] sm:$0xff]
    %v277 = vld [vmem:[#allocation6 + $0x8] sm:$0xff]
    %v278 = vld [vmem:[#allocation6 + $0x10] sm:$0xff]
    %v279 = vld [vmem:[#allocation6 + $0x18] sm:$0xff]
    %v280 = vld [vmem:[#allocation6 + $0x20] sm:$0xff]
    %v281 = vld [vmem:[#allocation6 + $0x28] sm:$0xff]
    %v282 = vld [vmem:[#allocation6 + $0x30] sm:$0xff]
    %v283 = vld [vmem:[#allocation6 + $0x38] sm:$0xff]
    %v284 = vld [vmem:[#allocation6 + $0x40] sm:$0xff]
    %v285 = vld [vmem:[#allocation6 + $0x48] sm:$0xff]
    %v286 = vld [vmem:[#allocation6 + $0x50] sm:$0xff]
    %v287 = vld [vmem:[#allocation6 + $0x58] sm:$0xff]
    %v288 = vld [vmem:[#allocation6 + $0x60] sm:$0xff]
    %v289 = vld [vmem:[#allocation6 + $0x68] sm:$0xff]
    %v290 = vld [vmem:[#allocation6 + $0x70] sm:$0xff]
    %v291 = vld [vmem:[#allocation6 + $0x78] sm:$0xff]
    %v292 = vld [vmem:[%s7] sm:$0x1]
    %v294 = vlaneseq
    %v295 = vshrl.u32 %v294, 7
    %v296 = vsub.s32 0, %v295
    %v297 = vrot.slane %v292, %v296
    %299 = vmatprep.subr.mxu0 0.0
    %300 = vmatpush1.msra.mxu0 %v276
    %301 = vmatprep.subr.mxu0 0.0
    %302 = vmatpush1.msra.mxu0 %v277
    %303 = vmatprep.subr.mxu0 0.0
    %304 = vmatpush1.msra.mxu0 %v278
    %305 = vmatprep.subr.mxu0 0.0
    %306 = vmatpush1.msra.mxu0 %v279
    %307 = vmatprep.subr.mxu0 0.0
    %308 = vmatpush1.msra.mxu0 %v280
    %309 = vmatprep.subr.mxu0 0.0
    %310 = vmatpush1.msra.mxu0 %v281
    %311 = vmatprep.subr.mxu0 0.0
    %312 = vmatpush1.msra.mxu0 %v282
    %313 = vmatprep.subr.mxu0 0.0
    %314 = vmatpush1.msra.mxu0 %v283
    %315 = vmatprep.subr.mxu0 0.0
    %316 = vmatpush1.msra.mxu0 %v284
    %317 = vmatprep.subr.mxu0 0.0
    %318 = vmatpush1.msra.mxu0 %v285
    %319 = vmatprep.subr.mxu0 0.0
    %320 = vmatpush1.msra.mxu0 %v286
    %321 = vmatprep.subr.mxu0 0.0
    %322 = vmatpush1.msra.mxu0 %v287
    %323 = vmatprep.subr.mxu0 0.0
    %324 = vmatpush1.msra.mxu0 %v288
    %325 = vmatprep.subr.mxu0 0.0
    %326 = vmatpush1.msra.mxu0 %v289
    %327 = vmatprep.subr.mxu0 0.0
    %328 = vmatpush1.msra.mxu0 %v290
    %329 = vmatprep.subr.mxu0 0.0
    %330 = vmatpush1.msra.mxu0 %v291
    %331 = vmatprep.subr.mxu0 0.0
    %332 = vmatpush1.msra.mxu0 0.0
    %333 = vmatprep.subr.mxu0 0.0
    %334 = vmatpush1.msra.mxu0 0.0
    %335 = vmatprep.subr.mxu0 0.0
    %336 = vmatpush1.msra.mxu0 0.0
    %337 = vmatprep.subr.mxu0 0.0
    %338 = vmatpush1.msra.mxu0 0.0
    %339 = vmatprep.subr.mxu0 0.0
    %340 = vmatpush1.msra.mxu0 0.0
    %341 = vmatprep.subr.mxu0 0.0
    %342 = vmatpush1.msra.mxu0 0.0
    %343 = vmatprep.subr.mxu0 0.0
    %344 = vmatpush1.msra.mxu0 0.0
    %345 = vmatprep.subr.mxu0 0.0
    %346 = vmatpush1.msra.mxu0 0.0
    %347 = vmatprep.subr.mxu0 0.0
    %348 = vmatpush1.msra.mxu0 0.0
    %349 = vmatprep.subr.mxu0 0.0
    %350 = vmatpush1.msra.mxu0 0.0
    %351 = vmatprep.subr.mxu0 0.0
    %352 = vmatpush1.msra.mxu0 0.0
    %353 = vmatprep.subr.mxu0 0.0
    %354 = vmatpush1.msra.mxu0 0.0
    %355 = vmatprep.subr.mxu0 0.0
    %356 = vmatpush1.msra.mxu0 0.0
    %357 = vmatprep.subr.mxu0 0.0
    %358 = vmatpush1.msra.mxu0 0.0
    %359 = vmatprep.subr.mxu0 0.0
    %360 = vmatpush1.msra.mxu0 0.0
    %361 = vmatprep.subr.mxu0 0.0
    %362 = vmatpush1.msra.mxu0 0.0
    %363 = vmatprep.mubr.f32.mxu0 0.0
    %364 = vmatmul.mubr.f32.gmra.mrb[0].mxu0 %v274
    %v365 = vpop.f32.mrb[0].mxu0
    %v366 = vadd.f32 %v297, %v365
    %v367 = vpop.f32.mrb[0].mxu0
    %368 = vmatprep.mubr.f32.mxu0 0.0
    %369 = vmatmul.mubr.f32.gmra.mrb[0].mxu0 %v275
    %v370 = vpop.f32.mrb[0].mxu0
    %v371 = vadd.f32 %v297, %v370
    %v372 = vpop.f32.mrb[0].mxu0
    %373 = vdwg.mxu0
    %374 = vst [vmem:[%s8] sm:$0xff] %v366
    %375 = vmax.xlane.f32.xlu0 %v366
    %v376 = vpop.xlane.xlu0 %375
    %377 = vmax.xlane.f32.xlu0 %v371
    %v378 = vpop.xlane.xlu0 %377
    %v379 = vsub.f32 %v366, %v376
    %v380 = vsub.f32 %v371, %v378
    %v381 = vmul.f32 %v379, 1.442695
    %v382 = vpow.pop %v381
    %v383 = vmul.f32 %v380, 1.442695
    %v384 = vpow.pop %v383
    %385 = vadd.xlane.f32.xlu0 %v382
    %v386 = vpop.xlane.xlu0 %385
    %387 = vadd.xlane.f32.xlu0 %v384
    %v388 = vpop.xlane.xlu0 %387
    %v389 = vrcp.pop %v386
    %v390 = vrcp.pop %v388
    %v391 = vmul.f32 %v382, %v389
    %v392 = vmul.f32 %v384, %v390
    %v393 = vmul.f32 %v391, %v391
    %v394 = vmul.f32 %v392, %v392
    %395 = vadd.xlane.f32.xlu0 %v393
    %v396 = vpop.xlane.xlu0 %395
    %397 = vadd.xlane.f32.xlu0 %v394
    %v398 = vpop.xlane.xlu0 %397
    %v399 = vrsqrt.pop %v396
    %v400 = vrsqrt.pop %v398
    %v401 = vmul.f32 %v391, %v399
    %v402 = vmul.f32 %v392, %v400
    %403 = vmatprep.subr.mxu0 0.0
    %404 = vmatpush1.xpose.msra.mxu0 %v401
    %405 = vmatprep.subr.mxu0 0.0
    %406 = vmatpush1.xpose.msra.mxu0 0.0
    %407 = vmatprep.subr.mxu0 0.0
    %408 = vmatpush1.xpose.msra.mxu0 0.0
    %409 = vmatprep.subr.mxu0 0.0
    %410 = vmatpush1.xpose.msra.mxu0 0.0
    %411 = vmatprep.subr.mxu0 0.0
    %412 = vmatpush1.xpose.msra.mxu0 0.0
    %413 = vmatprep.subr.mxu0 0.0
    %414 = vmatpush1.xpose.msra.mxu0 0.0
    %415 = vmatprep.subr.mxu0 0.0
    %416 = vmatpush1.xpose.msra.mxu0 0.0
    %417 = vmatprep.subr.mxu0 0.0
    %418 = vmatpush1.xpose.msra.mxu0 0.0
    %419 = vmatprep.subr.mxu0 0.0
    %420 = vmatpush1.xpose.msra.mxu0 0.0
    %421 = vmatprep.subr.mxu0 0.0
    %422 = vmatpush1.xpose.msra.mxu0 0.0
    %423 = vmatprep.subr.mxu0 0.0
    %424 = vmatpush1.xpose.msra.mxu0 0.0
    %425 = vmatprep.subr.mxu0 0.0
    %426 = vmatpush1.xpose.msra.mxu0 0.0
    %427 = vmatprep.subr.mxu0 0.0
    %428 = vmatpush1.xpose.msra.mxu0 0.0
    %429 = vmatprep.subr.mxu0 0.0
    %430 = vmatpush1.xpose.msra.mxu0 0.0
    %431 = vmatprep.subr.mxu0 0.0
    %432 = vmatpush1.xpose.msra.mxu0 0.0
    %433 = vmatprep.subr.mxu0 0.0
    %434 = vmatpush1.xpose.msra.mxu0 0.0
    %435 = vmatprep.subr.mxu0 0.0
    %436 = vmatpush1.xpose.msra.mxu0 0.0
    %437 = vmatprep.subr.mxu0 0.0
    %438 = vmatpush1.xpose.msra.mxu0 0.0
    %439 = vmatprep.subr.mxu0 0.0
    %440 = vmatpush1.xpose.msra.mxu0 0.0
    %441 = vmatprep.subr.mxu0 0.0
    %442 = vmatpush1.xpose.msra.mxu0 0.0
    %443 = vmatprep.subr.mxu0 0.0
    %444 = vmatpush1.xpose.msra.mxu0 0.0
    %445 = vmatprep.subr.mxu0 0.0
    %446 = vmatpush1.xpose.msra.mxu0 0.0
    %447 = vmatprep.subr.mxu0 0.0
    %448 = vmatpush1.xpose.msra.mxu0 0.0
    %449 = vmatprep.subr.mxu0 0.0
    %450 = vmatpush1.xpose.msra.mxu0 0.0
    %451 = vmatprep.subr.mxu0 0.0
    %452 = vmatpush1.xpose.msra.mxu0 0.0
    %453 = vmatprep.subr.mxu0 0.0
    %454 = vmatpush1.xpose.msra.mxu0 0.0
    %455 = vmatprep.subr.mxu0 0.0
    %456 = vmatpush1.xpose.msra.mxu0 0.0
    %457 = vmatprep.subr.mxu0 0.0
    %458 = vmatpush1.xpose.msra.mxu0 0.0
    %459 = vmatprep.subr.mxu0 0.0
    %460 = vmatpush1.xpose.msra.mxu0 0.0
    %461 = vmatprep.subr.mxu0 0.0
    %462 = vmatpush1.xpose.msra.mxu0 0.0
    %463 = vmatprep.subr.mxu0 0.0
    %464 = vmatpush1.xpose.msra.mxu0 0.0
    %465 = vmatprep.subr.mxu0 0.0
    %466 = vmatpush1.xpose.msra.mxu0 0.0
    %467 = vmatprep.mubr.f32.mxu0 0.0
    %468 = vmatmul.mubr.f32.gmra.mrb[0].mxu0 %v401
    %v469 = vpop.f32.mrb[0].mxu0
    %v470 = vadd.f32 0.0, %v469
    %v471 = vpop.f32.mrb[0].mxu0
    %472 = vdwg.mxu0
    %473 = vmatprep.subr.mxu0 0.0
    %474 = vmatpush1.xpose.msra.mxu0 %v402
    %475 = vmatprep.subr.mxu0 0.0
    %476 = vmatpush1.xpose.msra.mxu0 0.0
    %477 = vmatprep.subr.mxu0 0.0
    %478 = vmatpush1.xpose.msra.mxu0 0.0
    %479 = vmatprep.subr.mxu0 0.0
    %480 = vmatpush1.xpose.msra.mxu0 0.0
    %481 = vmatprep.subr.mxu0 0.0
    %482 = vmatpush1.xpose.msra.mxu0 0.0
    %483 = vmatprep.subr.mxu0 0.0
    %484 = vmatpush1.xpose.msra.mxu0 0.0
    %485 = vmatprep.subr.mxu0 0.0
    %486 = vmatpush1.xpose.msra.mxu0 0.0
    %487 = vmatprep.subr.mxu0 0.0
    %488 = vmatpush1.xpose.msra.mxu0 0.0
    %489 = vmatprep.subr.mxu0 0.0
    %490 = vmatpush1.xpose.msra.mxu0 0.0
    %491 = vmatprep.subr.mxu0 0.0
    %492 = vmatpush1.xpose.msra.mxu0 0.0
    %493 = vmatprep.subr.mxu0 0.0
    %494 = vmatpush1.xpose.msra.mxu0 0.0
    %495 = vmatprep.subr.mxu0 0.0
    %496 = vmatpush1.xpose.msra.mxu0 0.0
    %497 = vmatprep.subr.mxu0 0.0
    %498 = vmatpush1.xpose.msra.mxu0 0.0
    %499 = vmatprep.subr.mxu0 0.0
    %500 = vmatpush1.xpose.msra.mxu0 0.0
    %501 = vmatprep.subr.mxu0 0.0
    %502 = vmatpush1.xpose.msra.mxu0 0.0
    %503 = vmatprep.subr.mxu0 0.0
    %504 = vmatpush1.xpose.msra.mxu0 0.0
    %505 = vmatprep.subr.mxu0 0.0
    %506 = vmatpush1.xpose.msra.mxu0 0.0
    %507 = vmatprep.subr.mxu0 0.0
    %508 = vmatpush1.xpose.msra.mxu0 0.0
    %509 = vmatprep.subr.mxu0 0.0
    %510 = vmatpush1.xpose.msra.mxu0 0.0
    %511 = vmatprep.subr.mxu0 0.0
    %512 = vmatpush1.xpose.msra.mxu0 0.0
    %513 = vmatprep.subr.mxu0 0.0
    %514 = vmatpush1.xpose.msra.mxu0 0.0
    %515 = vmatprep.subr.mxu0 0.0
    %516 = vmatpush1.xpose.msra.mxu0 0.0
    %517 = vmatprep.subr.mxu0 0.0
    %518 = vmatpush1.xpose.msra.mxu0 0.0
    %519 = vmatprep.subr.mxu0 0.0
    %520 = vmatpush1.xpose.msra.mxu0 0.0
    %521 = vmatprep.subr.mxu0 0.0
    %522 = vmatpush1.xpose.msra.mxu0 0.0
    %523 = vmatprep.subr.mxu0 0.0
    %524 = vmatpush1.xpose.msra.mxu0 0.0
    %525 = vmatprep.subr.mxu0 0.0
    %526 = vmatpush1.xpose.msra.mxu0 0.0
    %527 = vmatprep.subr.mxu0 0.0
    %528 = vmatpush1.xpose.msra.mxu0 0.0
    %529 = vmatprep.subr.mxu0 0.0
    %530 = vmatpush1.xpose.msra.mxu0 0.0
    %531 = vmatprep.subr.mxu0 0.0
    %532 = vmatpush1.xpose.msra.mxu0 0.0
    %533 = vmatprep.subr.mxu0 0.0
    %534 = vmatpush1.xpose.msra.mxu0 0.0
    %535 = vmatprep.subr.mxu0 0.0
    %536 = vmatpush1.xpose.msra.mxu0 0.0
    %537 = vmatprep.mubr.f32.mxu0 0.0
    %538 = vmatmul.mubr.f32.gmra.mrb[0].mxu0 %v402
    %v539 = vpop.f32.mrb[0].mxu0
    %v540 = vadd.f32 0.0, %v539
    %v541 = vpop.f32.mrb[0].mxu0
    %542 = vdwg.mxu0
    %v543 = vmul.f32 %v75, %v75
    %544 = vadd.xlane.f32.xlu0 %v543
    %v545 = vpop.xlane.xlu0 %544
    %v546 = vrsqrt.pop %v545
    %v547 = vmul.f32 %v75, %v546
    %548 = vmatprep.subr.mxu0 0.0
    %549 = vmatpush1.xpose.msra.mxu0 %v547
    %550 = vmatprep.subr.mxu0 0.0
    %551 = vmatpush1.xpose.msra.mxu0 0.0
    %552 = vmatprep.subr.mxu0 0.0
    %553 = vmatpush1.xpose.msra.mxu0 0.0
    %554 = vmatprep.subr.mxu0 0.0
    %555 = vmatpush1.xpose.msra.mxu0 0.0
    %556 = vmatprep.subr.mxu0 0.0
    %557 = vmatpush1.xpose.msra.mxu0 0.0
    %558 = vmatprep.subr.mxu0 0.0
    %559 = vmatpush1.xpose.msra.mxu0 0.0
    %560 = vmatprep.subr.mxu0 0.0
    %561 = vmatpush1.xpose.msra.mxu0 0.0
    %562 = vmatprep.subr.mxu0 0.0
    %563 = vmatpush1.xpose.msra.mxu0 0.0
    %564 = vmatprep.subr.mxu0 0.0
    %565 = vmatpush1.xpose.msra.mxu0 0.0
    %566 = vmatprep.subr.mxu0 0.0
    %567 = vmatpush1.xpose.msra.mxu0 0.0
    %568 = vmatprep.subr.mxu0 0.0
    %569 = vmatpush1.xpose.msra.mxu0 0.0
    %570 = vmatprep.subr.mxu0 0.0
    %571 = vmatpush1.xpose.msra.mxu0 0.0
    %572 = vmatprep.subr.mxu0 0.0
    %573 = vmatpush1.xpose.msra.mxu0 0.0
    %574 = vmatprep.subr.mxu0 0.0
    %575 = vmatpush1.xpose.msra.mxu0 0.0
    %576 = vmatprep.subr.mxu0 0.0
    %577 = vmatpush1.xpose.msra.mxu0 0.0
    %578 = vmatprep.subr.mxu0 0.0
    %579 = vmatpush1.xpose.msra.mxu0 0.0
    %580 = vmatprep.subr.mxu0 0.0
    %581 = vmatpush1.xpose.msra.mxu0 0.0
    %582 = vmatprep.subr.mxu0 0.0
    %583 = vmatpush1.xpose.msra.mxu0 0.0
    %584 = vmatprep.subr.mxu0 0.0
    %585 = vmatpush1.xpose.msra.mxu0 0.0
    %586 = vmatprep.subr.mxu0 0.0
    %587 = vmatpush1.xpose.msra.mxu0 0.0
    %588 = vmatprep.subr.mxu0 0.0
    %589 = vmatpush1.xpose.msra.mxu0 0.0
    %590 = vmatprep.subr.mxu0 0.0
    %591 = vmatpush1.xpose.msra.mxu0 0.0
    %592 = vmatprep.subr.mxu0 0.0
    %593 = vmatpush1.xpose.msra.mxu0 0.0
    %594 = vmatprep.subr.mxu0 0.0
    %595 = vmatpush1.xpose.msra.mxu0 0.0
    %596 = vmatprep.subr.mxu0 0.0
    %597 = vmatpush1.xpose.msra.mxu0 0.0
    %598 = vmatprep.subr.mxu0 0.0
    %599 = vmatpush1.xpose.msra.mxu0 0.0
    %600 = vmatprep.subr.mxu0 0.0
    %601 = vmatpush1.xpose.msra.mxu0 0.0
    %602 = vmatprep.subr.mxu0 0.0
    %603 = vmatpush1.xpose.msra.mxu0 0.0
    %604 = vmatprep.subr.mxu0 0.0
    %605 = vmatpush1.xpose.msra.mxu0 0.0
    %606 = vmatprep.subr.mxu0 0.0
    %607 = vmatpush1.xpose.msra.mxu0 0.0
    %608 = vmatprep.subr.mxu0 0.0
    %609 = vmatpush1.xpose.msra.mxu0 0.0
    %610 = vmatprep.subr.mxu0 0.0
    %611 = vmatpush1.xpose.msra.mxu0 0.0
    %612 = vmatprep.mubr.f32.mxu0 0.0
    %613 = vmatmul.mubr.f32.gmra.mrb[0].mxu0 %v547
    %v614 = vpop.f32.mrb[0].mxu0
    %v615 = vadd.f32 0.0, %v614
    %v616 = vpop.f32.mrb[0].mxu0
    %617 = vdwg.mxu0
    %vm618 = vcmp.gt.f32.partialorder %v540, 0.9
    %v619 = vsel %vm618, 1, 0
    %v620 = vcvt.s32.f32 %v619
    %622 = vrot.lane.b32.xlu0 %v540, 8
    %v623 = vpop.permute.xlu0 %622
    %626 = vrot.lane.b32.xlu0 %v615, 16
    %v627 = vpop.permute.xlu0 %626
    %630 = vrot.lane.b32.xlu0 %v620, 24
    %v631 = vpop.permute.xlu0 %630
    %vm633 = vcmask 64512
    %v634 = vsel %vm633, %v470, %v623
    %vm635 = vcmask 130048
    %v636 = vsel %vm635, %v634, %v627
    %vm637 = vcmask 195584
    %v638 = vsel %vm637, %v636, %v631
    %vm639 = vcmask 261120
    %640 = vst.msk [vmem:[%s9] sm:$0xff] %vm639, %v638
    %641 = vmax.xlane.f32.xlu0 %v392
    %v642 = vpop.xlane.xlu0 %641
    %vm643 = vcmp.gt.f32.partialorder %v642, 0.75
    %v644 = vsel %vm643, 1, 0
    %v645 = vcvt.s32.f32 %v644
    %vm646 = vcmp.ge.f32.partialorder %v392, %v642
    %v647 = vsel %vm646, 1, 0
    %v648 = vcvt.s32.f32 %v647
    %v649 = vmul.f32 %v648, %v645
    %650 = vmatprep.subr.mxu0 0.0
    %651 = vmatpush1.xpose.msra.mxu0 %v174
    %652 = vmatprep.subr.mxu0 0.0
    %653 = vmatpush1.xpose.msra.mxu0 %v175
    %654 = vmatprep.subr.mxu0 0.0
    %655 = vmatpush1.xpose.msra.mxu0 0.0
    %656 = vmatprep.subr.mxu0 0.0
    %657 = vmatpush1.xpose.msra.mxu0 0.0
    %658 = vmatprep.subr.mxu0 0.0
    %659 = vmatpush1.xpose.msra.mxu0 0.0
    %660 = vmatprep.subr.mxu0 0.0
    %661 = vmatpush1.xpose.msra.mxu0 0.0
    %662 = vmatprep.subr.mxu0 0.0
    %663 = vmatpush1.xpose.msra.mxu0 0.0
    %664 = vmatprep.subr.mxu0 0.0
    %665 = vmatpush1.xpose.msra.mxu0 0.0
    %666 = vmatprep.subr.mxu0 0.0
    %667 = vmatpush1.xpose.msra.mxu0 0.0
    %668 = vmatprep.subr.mxu0 0.0
    %669 = vmatpush1.xpose.msra.mxu0 0.0
    %670 = vmatprep.subr.mxu0 0.0
    %671 = vmatpush1.xpose.msra.mxu0 0.0
    %672 = vmatprep.subr.mxu0 0.0
    %673 = vmatpush1.xpose.msra.mxu0 0.0
    %674 = vmatprep.subr.mxu0 0.0
    %675 = vmatpush1.xpose.msra.mxu0 0.0
    %676 = vmatprep.subr.mxu0 0.0
    %677 = vmatpush1.xpose.msra.mxu0 0.0
    %678 = vmatprep.subr.mxu0 0.0
    %679 = vmatpush1.xpose.msra.mxu0 0.0
    %680 = vmatprep.subr.mxu0 0.0
    %681 = vmatpush1.xpose.msra.mxu0 0.0
    %682 = vmatprep.subr.mxu0 0.0
    %683 = vmatpush1.xpose.msra.mxu0 0.0
    %684 = vmatprep.subr.mxu0 0.0
    %685 = vmatpush1.xpose.msra.mxu0 0.0
    %686 = vmatprep.subr.mxu0 0.0
    %687 = vmatpush1.xpose.msra.mxu0 0.0
    %688 = vmatprep.subr.mxu0 0.0
    %689 = vmatpush1.xpose.msra.mxu0 0.0
    %690 = vmatprep.subr.mxu0 0.0
    %691 = vmatpush1.xpose.msra.mxu0 0.0
    %692 = vmatprep.subr.mxu0 0.0
    %693 = vmatpush1.xpose.msra.mxu0 0.0
    %694 = vmatprep.subr.mxu0 0.0
    %695 = vmatpush1.xpose.msra.mxu0 0.0
    %696 = vmatprep.subr.mxu0 0.0
    %697 = vmatpush1.xpose.msra.mxu0 0.0
    %698 = vmatprep.subr.mxu0 0.0
    %699 = vmatpush1.xpose.msra.mxu0 0.0
    %700 = vmatprep.subr.mxu0 0.0
    %701 = vmatpush1.xpose.msra.mxu0 0.0
    %702 = vmatprep.subr.mxu0 0.0
    %703 = vmatpush1.xpose.msra.mxu0 0.0
    %704 = vmatprep.subr.mxu0 0.0
    %705 = vmatpush1.xpose.msra.mxu0 0.0
    %706 = vmatprep.subr.mxu0 0.0
    %707 = vmatpush1.xpose.msra.mxu0 0.0
    %708 = vmatprep.subr.mxu0 0.0
    %709 = vmatpush1.xpose.msra.mxu0 0.0
    %710 = vmatprep.subr.mxu0 0.0
    %711 = vmatpush1.xpose.msra.mxu0 0.0
    %712 = vmatprep.subr.mxu0 0.0
    %713 = vmatpush1.xpose.msra.mxu0 0.0
    %714 = vmatprep.mubr.f32.mxu0 0.0
    %715 = vmatmul.mubr.f32.gmra.mrb[0].mxu0 %v174
    %v716 = vpop.f32.mrb[0].mxu0
    %v717 = vadd.f32 0.0, %v716
    %v718 = vpop.f32.mrb[0].mxu0
    %719 = vmatprep.mubr.f32.mxu0 0.0
    %720 = vmatmul.mubr.f32.gmra.mrb[0].mxu0 %v175
    %v721 = vpop.f32.mrb[0].mxu0
    %v722 = vadd.f32 0.0, %v721
    %v723 = vpop.f32.mrb[0].mxu0
    %724 = vdwg.mxu0
    %v725 = vlaneseq
    %v726 = vshrl.u32 %v725, 7
    %v727 = vadd.s32 %v726, 8
    %v728 = vlaneseq
    %v729 = vand.u32 %v728, 127
    %vm730 = vcmp.eq.s32.totalorder %v726, %v729
    %vm731 = vcmp.eq.s32.totalorder %v727, %v729
    %v732 = vsel %vm730, 1, 0
    %v733 = vsel %vm731, 1, 0
    %v734 = vcvt.s32.f32 %v732
    %v735 = vcvt.s32.f32 %v733
    %v736 = vmul.f32 %v734, %v717
    %v737 = vmul.f32 %v735, %v722
    %v738 = vsel %vm635, %v736, 0.0
    %v739 = vsel %vm635, %v737, 0.0
    %v740 = vadd.f32 %v738, %v739
    %v741 = vrot.slane %v740, 4
    %v742 = vadd.f32 %v740, %v741
    %v743 = vrot.slane %v742, 2
    %v744 = vadd.f32 %v742, %v743
    %v745 = vrot.slane %v744, 1
    %v746 = vadd.f32 %v744, %v745
    %747 = vadd.xlane.f32.xlu0 %v738
    %v748 = vpop.xlane.xlu0 %747
    %749 = vadd.xlane.f32.xlu0 %v739
    %v750 = vpop.xlane.xlu0 %749
    %v751 = vadd.f32 %v748, %v746
    %v752 = vadd.f32 %v750, %v746
    %v753 = vmul.f32 %v717, 2.0
    %v754 = vmul.f32 %v722, 2.0
    %v755 = vsub.f32 %v751, %v753
    %v756 = vsub.f32 %v752, %v754
    %v757 = vmax.f32 %v755, 0.0
    %v758 = vmax.f32 %v756, 0.0
    %v759 = vmul.f32 %v757, -0.0061728396
    %v760 = vmul.f32 %v758, -0.0061728396
    %v761 = vmul.f32 %v759, 1.442695
    %v762 = vpow.pop %v761
    %v763 = vmul.f32 %v760, 1.442695
    %v764 = vpow.pop %v763
    %v765 = vmul.f32 %v757, -0.5
    %v766 = vmul.f32 %v758, -0.5
    %v767 = vmul.f32 %v765, 1.442695
    %v768 = vpow.pop %v767
    %v769 = vmul.f32 %v766, 1.442695
    %v770 = vpow.pop %v769
    %vm771 = vcmp.lt.s32.totalorder %v726, 8
    %vm772 = vcmp.lt.s32.totalorder %v727, 8
    %vm773 = vcmp.lt.s32.totalorder %v729, 8
    %vm774 = vmand %vm771, %vm773
    %vm775 = vmand %vm772, %vm773
    %v776 = vsel %vm774, 1, 0
    %v777 = vsel %vm775, 1, 0
    %v778 = vcvt.s32.f32 %v776
    %v779 = vcvt.s32.f32 %v777
    %vm780 = vmxor %vm771, 1
    %vm781 = vmxor %vm772, 1
    %vm782 = vmxor %vm773, 1
    %vm783 = vmand %vm780, %vm782
    %vm784 = vmand %vm781, %vm782
    %v785 = vsel %vm783, 1, 0
    %v786 = vsel %vm784, 1, 0
    %v787 = vcvt.s32.f32 %v785
    %v788 = vcvt.s32.f32 %v786
    %vm789 = vmand %vm771, %vm782
    %vm790 = vmand %vm772, %vm782
    %v791 = vsel %vm789, 1, 0
    %v792 = vsel %vm790, 1, 0
    %v793 = vcvt.s32.f32 %v791
    %v794 = vcvt.s32.f32 %v792
    %v795 = vmul.f32 %v762, %v778
    %v796 = vmul.f32 %v764, %v779
    %v797 = vsel %vm635, %v795, 0.0
    %v798 = vsel %vm635, %v796, 0.0
    %v799 = vadd.f32 %v797, %v798
    %800 = vadd.xlane.f32.xlu0 %v799
    %v801 = vpop.xlane.xlu0 %800
    %v802 = vrot.slane %v801, 4
    %v803 = vadd.f32 %v801, %v802
    %v804 = vrot.slane %v803, 2
    %v805 = vadd.f32 %v803, %v804
    %v806 = vrot.slane %v805, 1
    %v807 = vadd.f32 %v805, %v806
    %s808 = vtos %v807
    %s809 = smul.f32 %s808, 0.015625
    %v810 = vmul.f32 %v762, %v787
    %v811 = vmul.f32 %v764, %v788
    %v812 = vsel %vm635, %v810, 0.0
    %v813 = vsel %vm635, %v811, 0.0
    %v814 = vadd.f32 %v812, %v813
    %815 = vadd.xlane.f32.xlu0 %v814
    %v816 = vpop.xlane.xlu0 %815
    %v817 = vrot.slane %v816, 4
    %v818 = vadd.f32 %v816, %v817
    %v819 = vrot.slane %v818, 2
    %v820 = vadd.f32 %v818, %v819
    %v821 = vrot.slane %v820, 1
    %v822 = vadd.f32 %v820, %v821
    %s823 = vtos %v822
    %s824 = smul.f32 %s823, 0.015625
    %s825 = sadd.f32 %s809, %s824
    %v826 = vmul.f32 %v762, %v793
    %v827 = vmul.f32 %v764, %v794
    %v828 = vsel %vm635, %v826, 0.0
    %v829 = vsel %vm635, %v827, 0.0
    %v830 = vadd.f32 %v828, %v829
    %831 = vadd.xlane.f32.xlu0 %v830
    %v832 = vpop.xlane.xlu0 %831
    %v833 = vrot.slane %v832, 4
    %v834 = vadd.f32 %v832, %v833
    %v835 = vrot.slane %v834, 2
    %v836 = vadd.f32 %v834, %v835
    %v837 = vrot.slane %v836, 1
    %v838 = vadd.f32 %v836, %v837
    %s839 = vtos %v838
    %s840 = smul.f32 %s839, 2.0
    %s841 = smul.f32 %s840, 0.015625
    %s842 = ssub.f32 %s825, %s841
    %v844 = vsel %vm635, %v768, 0
    %v847 = vsel %vm635, %v770, 0
    %849 = vmatprep.subr.mxu0 0.0
    %850 = vmatpush1.msra.mxu0 %v75
    %851 = vmatprep.subr.mxu0 0.0
    %852 = vmatpush1.msra.mxu0 0.0
    %853 = vmatprep.subr.mxu0 0.0
    %854 = vmatpush1.msra.mxu0 0.0
    %855 = vmatprep.subr.mxu0 0.0
    %856 = vmatpush1.msra.mxu0 0.0
    %857 = vmatprep.subr.mxu0 0.0
    %858 = vmatpush1.msra.mxu0 0.0
    %859 = vmatprep.subr.mxu0 0.0
    %860 = vmatpush1.msra.mxu0 0.0
    %861 = vmatprep.subr.mxu0 0.0
    %862 = vmatpush1.msra.mxu0 0.0
    %863 = vmatprep.subr.mxu0 0.0
    %864 = vmatpush1.msra.mxu0 0.0
    %865 = vmatprep.subr.mxu0 0.0
    %866 = vmatpush1.msra.mxu0 0.0
    %867 = vmatprep.subr.mxu0 0.0
    %868 = vmatpush1.msra.mxu0 0.0
    %869 = vmatprep.subr.mxu0 0.0
    %870 = vmatpush1.msra.mxu0 0.0
    %871 = vmatprep.subr.mxu0 0.0
    %872 = vmatpush1.msra.mxu0 0.0
    %873 = vmatprep.subr.mxu0 0.0
    %874 = vmatpush1.msra.mxu0 0.0
    %875 = vmatprep.subr.mxu0 0.0
    %876 = vmatpush1.msra.mxu0 0.0
    %877 = vmatprep.subr.mxu0 0.0
    %878 = vmatpush1.msra.mxu0 0.0
    %879 = vmatprep.subr.mxu0 0.0
    %880 = vmatpush1.msra.mxu0 0.0
    %881 = vmatprep.subr.mxu0 0.0
    %882 = vmatpush1.msra.mxu0 0.0
    %883 = vmatprep.subr.mxu0 0.0
    %884 = vmatpush1.msra.mxu0 0.0
    %885 = vmatprep.subr.mxu0 0.0
    %886 = vmatpush1.msra.mxu0 0.0
    %887 = vmatprep.subr.mxu0 0.0
    %888 = vmatpush1.msra.mxu0 0.0
    %889 = vmatprep.subr.mxu0 0.0
    %890 = vmatpush1.msra.mxu0 0.0
    %891 = vmatprep.subr.mxu0 0.0
    %892 = vmatpush1.msra.mxu0 0.0
    %893 = vmatprep.subr.mxu0 0.0
    %894 = vmatpush1.msra.mxu0 0.0
    %895 = vmatprep.subr.mxu0 0.0
    %896 = vmatpush1.msra.mxu0 0.0
    %897 = vmatprep.subr.mxu0 0.0
    %898 = vmatpush1.msra.mxu0 0.0
    %899 = vmatprep.subr.mxu0 0.0
    %900 = vmatpush1.msra.mxu0 0.0
    %901 = vmatprep.subr.mxu0 0.0
    %902 = vmatpush1.msra.mxu0 0.0
    %903 = vmatprep.subr.mxu0 0.0
    %904 = vmatpush1.msra.mxu0 0.0
    %905 = vmatprep.subr.mxu0 0.0
    %906 = vmatpush1.msra.mxu0 0.0
    %907 = vmatprep.subr.mxu0 0.0
    %908 = vmatpush1.msra.mxu0 0.0
    %909 = vmatprep.subr.mxu0 0.0
    %910 = vmatpush1.msra.mxu0 0.0
    %911 = vmatprep.subr.mxu0 0.0
    %912 = vmatpush1.msra.mxu0 0.0
    %913 = vmatprep.mubr.f32.mxu0 0.0
    %914 = vmatmul.mubr.f32.gmra.mrb[0].mxu0 %v844
    %v915 = vpop.f32.mrb[0].mxu0
    %v916 = vadd.f32 0.0, %v915
    %v917 = vpop.f32.mrb[0].mxu0
    %918 = vmatprep.mubr.f32.mxu0 0.0
    %919 = vmatmul.mubr.f32.gmra.mrb[0].mxu0 %v847
    %v920 = vpop.f32.mrb[0].mxu0
    %v921 = vadd.f32 0.0, %v920
    %v922 = vpop.f32.mrb[0].mxu0
    %923 = vdwg.mxu0
    %924 = vmatprep.subr.mxu0 0.0
    %925 = vmatpush1.msra.mxu0 0.0
    %926 = vmatprep.subr.mxu0 0.0
    %927 = vmatpush1.msra.mxu0 %v649
    %928 = vmatprep.subr.mxu0 0.0
    %929 = vmatpush1.msra.mxu0 0.0
    %930 = vmatprep.subr.mxu0 0.0
    %931 = vmatpush1.msra.mxu0 0.0
    %932 = vmatprep.subr.mxu0 0.0
    %933 = vmatpush1.msra.mxu0 0.0
    %934 = vmatprep.subr.mxu0 0.0
    %935 = vmatpush1.msra.mxu0 0.0
    %936 = vmatprep.subr.mxu0 0.0
    %937 = vmatpush1.msra.mxu0 0.0
    %938 = vmatprep.subr.mxu0 0.0
    %939 = vmatpush1.msra.mxu0 0.0
    %940 = vmatprep.subr.mxu0 0.0
    %941 = vmatpush1.msra.mxu0 0.0
    %942 = vmatprep.subr.mxu0 0.0
    %943 = vmatpush1.msra.mxu0 0.0
    %944 = vmatprep.subr.mxu0 0.0
    %945 = vmatpush1.msra.mxu0 0.0
    %946 = vmatprep.subr.mxu0 0.0
    %947 = vmatpush1.msra.mxu0 0.0
    %948 = vmatprep.subr.mxu0 0.0
    %949 = vmatpush1.msra.mxu0 0.0
    %950 = vmatprep.subr.mxu0 0.0
    %951 = vmatpush1.msra.mxu0 0.0
    %952 = vmatprep.subr.mxu0 0.0
    %953 = vmatpush1.msra.mxu0 0.0
    %954 = vmatprep.subr.mxu0 0.0
    %955 = vmatpush1.msra.mxu0 0.0
    %956 = vmatprep.subr.mxu0 0.0
    %957 = vmatpush1.msra.mxu0 0.0
    %958 = vmatprep.subr.mxu0 0.0
    %959 = vmatpush1.msra.mxu0 0.0
    %960 = vmatprep.subr.mxu0 0.0
    %961 = vmatpush1.msra.mxu0 0.0
    %962 = vmatprep.subr.mxu0 0.0
    %963 = vmatpush1.msra.mxu0 0.0
    %964 = vmatprep.subr.mxu0 0.0
    %965 = vmatpush1.msra.mxu0 0.0
    %966 = vmatprep.subr.mxu0 0.0
    %967 = vmatpush1.msra.mxu0 0.0
    %968 = vmatprep.subr.mxu0 0.0
    %969 = vmatpush1.msra.mxu0 0.0
    %970 = vmatprep.subr.mxu0 0.0
    %971 = vmatpush1.msra.mxu0 0.0
    %972 = vmatprep.subr.mxu0 0.0
    %973 = vmatpush1.msra.mxu0 0.0
    %974 = vmatprep.subr.mxu0 0.0
    %975 = vmatpush1.msra.mxu0 0.0
    %976 = vmatprep.subr.mxu0 0.0
    %977 = vmatpush1.msra.mxu0 0.0
    %978 = vmatprep.subr.mxu0 0.0
    %979 = vmatpush1.msra.mxu0 0.0
    %980 = vmatprep.subr.mxu0 0.0
    %981 = vmatpush1.msra.mxu0 0.0
    %982 = vmatprep.subr.mxu0 0.0
    %983 = vmatpush1.msra.mxu0 0.0
    %984 = vmatprep.subr.mxu0 0.0
    %985 = vmatpush1.msra.mxu0 0.0
    %986 = vmatprep.subr.mxu0 0.0
    %987 = vmatpush1.msra.mxu0 0.0
    %988 = vmatprep.mubr.f32.mxu0 0.0
    %989 = vmatmul.mubr.f32.gmra.mrb[0].mxu0 %v844
    %v990 = vpop.f32.mrb[0].mxu0
    %v991 = vadd.f32 0.0, %v990
    %v992 = vpop.f32.mrb[0].mxu0
    %993 = vmatprep.mubr.f32.mxu0 0.0
    %994 = vmatmul.mubr.f32.gmra.mrb[0].mxu0 %v847
    %v995 = vpop.f32.mrb[0].mxu0
    %v996 = vadd.f32 0.0, %v995
    %v997 = vpop.f32.mrb[0].mxu0
    %998 = vdwg.mxu0
    %v999 = vmul.f32 %v75, %v916
    %v1000 = vmul.f32 %v921, 0.0
    %v1001 = vadd.f32 %v999, %v1000
    %v1002 = vrot.slane %v1001, 4
    %v1003 = vadd.f32 %v1001, %v1002
    %v1004 = vrot.slane %v1003, 2
    %v1005 = vadd.f32 %v1003, %v1004
    %v1006 = vrot.slane %v1005, 1
    %v1007 = vadd.f32 %v1005, %v1006
    %v1008 = vmul.f32 %v75, %v991
    %v1009 = vmul.f32 %v996, 0.0
    %v1010 = vadd.f32 %v1008, %v1009
    %v1011 = vrot.slane %v1010, 4
    %v1012 = vadd.f32 %v1010, %v1011
    %v1013 = vrot.slane %v1012, 2
    %v1014 = vadd.f32 %v1012, %v1013
    %v1015 = vrot.slane %v1014, 1
    %v1016 = vadd.f32 %v1014, %v1015
    %v1017 = vmul.f32 %v991, 0.0
    %v1018 = vmul.f32 %v649, %v996
    %v1019 = vadd.f32 %v1017, %v1018
    %v1020 = vrot.slane %v1019, 4
    %v1021 = vadd.f32 %v1019, %v1020
    %v1022 = vrot.slane %v1021, 2
    %v1023 = vadd.f32 %v1021, %v1022
    %v1024 = vrot.slane %v1023, 1
    %v1025 = vadd.f32 %v1023, %v1024
    %v1026 = vadd.f32 %v75, 0.0
    %v1027 = vrot.slane %v1026, 4
    %v1028 = vadd.f32 %v1026, %v1027
    %v1029 = vrot.slane %v1028, 2
    %v1030 = vadd.f32 %v1028, %v1029
    %v1031 = vrot.slane %v1030, 1
    %v1032 = vadd.f32 %v1030, %v1031
    %v1033 = vadd.f32 %v649, 0.0
    %v1034 = vrot.slane %v1033, 4
    %v1035 = vadd.f32 %v1033, %v1034
    %v1036 = vrot.slane %v1035, 2
    %v1037 = vadd.f32 %v1035, %v1036
    %v1038 = vrot.slane %v1037, 1
    %v1039 = vadd.f32 %v1037, %v1038
    %vm1040 = vcmp.gt.f32.partialorder %v1032, 0.0
    %vm1041 = vcmp.gt.f32.partialorder %v1039, 0.0
    %vm1042 = vmand %vm1040, %vm1041
    %v1043 = vmax.f32 %v1032, 1.0
    %v1044 = vmax.f32 %v1039, 1.0
    %v1045 = vmul.f32 %v1043, %v1043
    %v1046 = vrcp.pop %v1045
    %v1047 = vmul.f32 %v1007, %v1046
    %v1048 = vmul.f32 %v1044, %v1044
    %v1049 = vrcp.pop %v1048
    %v1050 = vmul.f32 %v1025, %v1049
    %v1051 = vadd.f32 %v1047, %v1050
    %v1052 = vmul.f32 %v1016, 2.0
    %v1053 = vmul.f32 %v1043, %v1044
    %v1054 = vrcp.pop %v1053
    %v1055 = vmul.f32 %v1052, %v1054
    %v1056 = vsub.f32 %v1051, %v1055
    %v1057 = vsel %vm1042, %v1056, 0.0
    %v1058 = vsel %vm1042, 1, 0
    %v1059 = vcvt.s32.f32 %v1058
    %vm1060 = vcmask 1040384
    %v1061 = vsel %vm1060, %v1059, 0.0
    %1062 = vadd.xlane.f32.xlu0 %v1061
    %v1063 = vpop.xlane.xlu0 %1062
    %v1064 = vrot.slane %v1063, 4
    %v1065 = vadd.f32 %v1063, %v1064
    %v1066 = vrot.slane %v1065, 2
    %v1067 = vadd.f32 %v1065, %v1066
    %v1068 = vrot.slane %v1067, 1
    %v1069 = vadd.f32 %v1067, %v1068
    %s1070 = vtos %v1069
    %v1071 = vsel %vm1060, %v1057, 0.0
    %1072 = vadd.xlane.f32.xlu0 %v1071
    %v1073 = vpop.xlane.xlu0 %1072
    %v1074 = vrot.slane %v1073, 4
    %v1075 = vadd.f32 %v1073, %v1074
    %v1076 = vrot.slane %v1075, 2
    %v1077 = vadd.f32 %v1075, %v1076
    %v1078 = vrot.slane %v1077, 1
    %v1079 = vadd.f32 %v1077, %v1078
    %s1080 = vtos %v1079
    %s1081 = smax.f32 %s1070, 1.0
    %v1082 = vstv %s1081
    %v1083 = vrcp.pop %v1082
    %s1084 = vtos %v1083
    %s1085 = smul.f32 %s1080, %s1084
    %vm1086 = vcmp.eq.s32.totalorder %v729, 0
    %v1087 = vstv %s842
    %v1088 = vstv %s1085
    %v1089 = vsel %vm1086, %v1087, %v1088
    %vm1090 = vcmask 8192
    %1091 = vst.msk [vmem:[%s10] sm:$0x1] %vm1090, %v1089
    // Predicated region
    $region46: #{transfer_net_forward.1} parent=1 // pred_check
      _
    $region47: #{transfer_net_forward.1} parent=1 // pred_check_branch
      %1093 = sbr.rel (0) target = $region49
    $region48: #{transfer_net_forward.1} parent=1 // pred_region
      _
    $region49: #{transfer_net_forward.1} parent=1 // pred_fallthru
      _
    // Predicated region
    $region50: #{transfer_net_forward.1} parent=1 // pred_check
      _
    $region51: #{transfer_net_forward.1} parent=1 // pred_check_branch
      %1095 = sbr.rel (0) target = $region53
    $region52: #{transfer_net_forward.1} parent=1 // pred_region
      _
    $region53: #{transfer_net_forward.1} parent=1 // pred_fallthru
      _
    // Predicated region
    $region54: #{transfer_net_forward.1} parent=1 // pred_check
      _
    $region55: #{transfer_net_forward.1} parent=1 // pred_check_branch
      %1097 = sbr.rel (0) target = $region57
    $region56: #{transfer_net_forward.1} parent=1 // pred_region
      _
    $region57: #{transfer_net_forward.1} parent=1 // pred_fallthru
      _
    // Predicated region
    $region58: #{transfer_net_forward.1} parent=1 // pred_check
      _
    $region59: #{transfer_net_forward.1} parent=1 // pred_check_branch
      %1099 = sbr.rel (0) target = $region61
    $region60: #{transfer_net_forward.1} parent=1 // pred_region
      _
    $region61: #{transfer_net_forward.1} parent=1 // pred_fallthru
      _
    // Predicated region
    $region62: #{transfer_net_forward.1} parent=1 // pred_check
      _
    $region63: #{transfer_net_forward.1} parent=1 // pred_check_branch
      %1101 = sbr.rel (0) target = $region65
    $region64: #{transfer_net_forward.1} parent=1 // pred_region
      _
    $region65: #{transfer_net_forward.1} parent=1 // pred_fallthru
      _
    // Predicated region
    $region66: #{transfer_net_forward.1} parent=1 // pred_check
      _
    $region67: #{transfer_net_forward.1} parent=1 // pred_check_branch
      %1103 = sbr.rel (0) target = $region69
    $region68: #{transfer_net_forward.1} parent=1 // pred_region
      _
    $region69: #{transfer_net_forward.1} parent=1 // pred_fallthru
      _
    %1104 = vsyncpa [#allocation3], 1
    %1105 = vsyncpa [#allocation5], 1

</llo_original>
